<compile_context>
chip_gen: v7x
topology: tpu7x:2x2x1
jax: 0.10.0
libtpu: 0.0.40
codegen_flags: <defaults>
</compile_context>

<pallas_src>
import functools

import jax
import jax.numpy as jnp
from jax.experimental import pallas as pl
from jax.experimental.pallas import tpu as pltpu

_VMEM_LIMIT = 32 * 1024 * 1024   # known-safe scoped-VMEM budget on v5e/v6e/v7x
_GUARD_R = 8                     # right guard: edge taps never read past the scratch


def _silu(x):
    return x * jax.nn.sigmoid(x)


def _left_guard(P, W):
    """Left guard G: >= P (taps never read below lane 0) and chosen so the
    interior of the flat padded scratch starts 128-lane aligned (G + P*W % 128 == 0)."""
    g = (-(P * W)) % 128
    if g < P:
        g += 128
    return g


# --------------------------------------------------------------------------- #
# Fused MBConv kernel (one grid step == one image of the batch)                #
# --------------------------------------------------------------------------- #
def _mbconv_kernel(*refs, K, stride, H, W, Ho, Wo, G, has_expand, has_skip):
    f32 = jnp.float32
    P = K // 2
    HW = H * W
    HWo = Ho * Wo

    it = iter(refs)
    x_ref = next(it)                                        # (1, cin, H*W) bf16
    if has_expand:
        w0_ref, s0_ref, b0_ref = next(it), next(it), next(it)
    wdw_ref, s1_ref, b1_ref = next(it), next(it), next(it)
    wse1_ref, bse1_ref = next(it), next(it)
    wse2_ref, bse2_ref = next(it), next(it)
    w2_ref, s2_ref, b2_ref = next(it), next(it), next(it)
    o_ref = next(it)                                        # (1, cout, Ho*Wo) f32
    pad_ref = next(it)                                      # (mid, G+(H+2P)*W+GR) bf16
    dw_ref = next(it, None)                                 # (mid, Ho*Wo) f32 (stride=2 only)

    C = pad_ref.shape[0]                                    # mid channels
    x = x_ref[0]                                            # (cin, HW) bf16

    # ---- 1. expansion 1x1 conv + folded BN + SiLU (channel-major NN matmul) --
    if has_expand:
        ex = jnp.dot(w0_ref[...], x, preferred_element_type=f32)     # (mid, HW)
        ex = _silu(ex * s0_ref[...] + b0_ref[...])
    else:
        ex = x.astype(f32)

    # ---- 2. H-padded flat scratch: zero only the pad-row slabs, then store ---
    pad_ref[:, pl.ds(G, P * W)] = jnp.zeros((C, P * W), pad_ref.dtype)
    pad_ref[:, pl.ds(G + (P + H) * W, P * W)] = jnp.zeros((C, P * W), pad_ref.dtype)
    pad_ref[:, pl.ds(G + P * W, HW)] = ex.astype(pad_ref.dtype)       # lane-aligned store

    # ---- 3. depthwise KxK conv; taps read straight from the scratch ref ------
    wdw = wdw_ref[...]                                      # (mid, K*K) f32, hoisted once
    if stride == 1:
        col = jax.lax.broadcasted_iota(jnp.int32, (1, HW), 1) % W
        acc = jnp.zeros((C, HW), f32)
        for kh in range(K):
            for kw in range(K):
                tap = pad_ref[:, pl.ds(G + kh * W + (kw - P), HW)].astype(f32)
                if kw != P:                                 # mask W-boundary wrap
                    ok = jnp.logical_and(col + (kw - P) >= 0, col + (kw - P) < W)
                    tap = jnp.where(ok, tap, 0.0)
                acc = acc + tap * wdw[:, kh * K + kw:kh * K + kw + 1]
        y = _silu(acc * s1_ref[...] + b1_ref[...])          # (mid, HWo)
    else:
        # stride-2: one output row at a time with hardware-strided lane reads.
        colw = jax.lax.broadcasted_iota(jnp.int32, (1, Wo), 1) * stride
        for ho in range(Ho):
            racc = jnp.zeros((C, Wo), f32)
            for kh in range(K):
                base = G + (ho * stride + kh) * W
                for kw in range(K):
                    tap = pad_ref[:, pl.ds(base + kw - P, Wo, stride=stride)].astype(f32)
                    if kw != P:
                        ok = jnp.logical_and(colw + (kw - P) >= 0, colw + (kw - P) < W)
                        tap = jnp.where(ok, tap, 0.0)
                    racc = racc + tap * wdw[:, kh * K + kw:kh * K + kw + 1]
            dw_ref[:, pl.ds(ho * Wo, Wo)] = racc
        y = _silu(dw_ref[...] * s1_ref[...] + b1_ref[...])  # (mid, HWo)

    # ---- 4. SE: fused squeeze (channel mean) + tiny MLP -> per-channel gate --
    pooled = jnp.mean(y, axis=1, keepdims=True)                              # (mid, 1)
    h = _silu(jnp.dot(wse1_ref[...], pooled, preferred_element_type=f32) + bse1_ref[...])
    gate = jax.nn.sigmoid(jnp.dot(wse2_ref[...], h, preferred_element_type=f32)
                          + bse2_ref[...])                                   # (mid, 1)

    # ---- 5. projection 1x1 conv + folded BN + SiLU (+ fused residual) --------
    o = jnp.dot(w2_ref[...], y * gate, preferred_element_type=f32)           # (cout, HWo)
    o = _silu(o * s2_ref[...] + b2_ref[...])                # act2 per the module spec
    if has_skip:
        o = o + x.astype(f32)                               # DropPath(0.0) == identity
    o_ref[0] = o.astype(o_ref.dtype)                        # lane-dense (cout, HWo) store


# --------------------------------------------------------------------------- #
# Wrapper: NCHW in -> NCHW out, single fused pallas_call                       #
# --------------------------------------------------------------------------- #
def mbconv_forward(x_nchw, params, *, cin, cout, expand, K, stride):
    assert stride in (1, 2)
    N, _, H, W = x_nchw.shape
    mid = cin * expand
    P = K // 2
    Ho = (H + 2 * P - K) // stride + 1
    Wo = (W + 2 * P - K) // stride + 1
    has_expand = expand > 1
    has_skip = stride == 1 and cin == cout
    G = _left_guard(P, W)
    pad_w = G + (H + 2 * P) * W + _GUARD_R

    bf16 = jnp.bfloat16
    # Flattened NCHW (free reshape) + one bf16 cast pass; no layout transposes.
    # TODO(synk): in a full network keep activations bf16 end-to-end so even this
    # cast pass disappears.
    x_flat = x_nchw.reshape(N, cin, H * W).astype(bf16)

    args = [x_flat]
    in_specs = [pl.BlockSpec((1, cin, H * W), lambda n: (n, 0, 0))]

    def add_param(p):
        args.append(p)
        in_specs.append(pl.BlockSpec(p.shape, lambda n: (0, 0)))   # all params are 2-D

    if has_expand:
        add_param(params["w0t"].astype(bf16))
        add_param(params["s0"])
        add_param(params["b0"])
    add_param(params["wdw"])
    add_param(params["s1"])
    add_param(params["b1"])
    add_param(params["w_se1t"])
    add_param(params["b_se1"])
    add_param(params["w_se2t"])
    add_param(params["b_se2"])
    add_param(params["w2t"])
    add_param(params["s2"])
    add_param(params["b2"])

    scratch = [pltpu.VMEM((mid, pad_w), bf16)]
    if stride != 1:
        scratch.append(pltpu.VMEM((mid, Ho * Wo), jnp.float32))

    kernel = functools.partial(_mbconv_kernel, K=K, stride=stride, H=H, W=W,
                               Ho=Ho, Wo=Wo, G=G,
                               has_expand=has_expand, has_skip=has_skip)
    out = pl.pallas_call(
        kernel,
        out_shape=jax.ShapeDtypeStruct((N, cout, Ho * Wo), jnp.float32),
        grid=(N,),
        in_specs=in_specs,
        out_specs=pl.BlockSpec((1, cout, Ho * Wo), lambda n: (n, 0, 0)),
        scratch_shapes=scratch,
        compiler_params=pltpu.CompilerParams(
            dimension_semantics=("parallel",),
            vmem_limit_bytes=_VMEM_LIMIT),
    )(*args)
    # TODO(synk): for large images (H*W*mid*4 approaching the VMEM budget) add an
    # H-strip grid axis with a P-row halo instead of whole-image-per-batch blocks.
    return out.reshape(N, cout, Ho, Wo)


# --------------------------------------------------------------------------- #
# Pure-JAX reference (same math; mirrors the bf16 storage boundaries)          #
# --------------------------------------------------------------------------- #
def ref_forward(x_nchw, params, *, cin, cout, expand, K, stride):
    f32, bf16 = jnp.float32, jnp.bfloat16
    N, _, H, W = x_nchw.shape
    mid = cin * expand
    P = K // 2
    Ho = (H + 2 * P - K) // stride + 1
    Wo = (W + 2 * P - K) // stride + 1
    x = x_nchw.astype(bf16).astype(f32)                     # (N, cin, H, W)
    xf = x.reshape(N, cin, H * W)
    if expand > 1:
        w0 = params["w0t"].astype(bf16).astype(f32)
        ex = jnp.einsum("mc,ncp->nmp", w0, xf)
        ex = _silu(ex * params["s0"][None] + params["b0"][None])
    else:
        ex = xf
    ex = ex.astype(bf16).astype(f32)                        # mirrors bf16 pad scratch
    e4 = ex.reshape(N, mid, H, W)
    ep = jnp.pad(e4, ((0, 0), (0, 0), (P, P), (P, P)))
    acc = jnp.zeros((N, mid, Ho, Wo), f32)
    for kh in range(K):
        for kw in range(K):
            acc = acc + ep[:, :, kh:kh + (Ho - 1) * stride + 1:stride,
                           kw:kw + (Wo - 1) * stride + 1:stride] \
                        * params["wdw"][:, kh * K + kw].reshape(1, mid, 1, 1)
    y = _silu(acc * params["s1"].reshape(1, mid, 1, 1)
              + params["b1"].reshape(1, mid, 1, 1))
    pooled = jnp.mean(y, axis=(2, 3))                       # (N, mid)
    h = _silu(pooled @ params["w_se1t"].T + params["b_se1"].reshape(1, -1))
    g = jax.nn.sigmoid(h @ params["w_se2t"].T + params["b_se2"].reshape(1, -1))
    yg = y * g[:, :, None, None]
    o = jnp.einsum("om,nmhw->nohw", params["w2t"], yg)
    o = _silu(o * params["s2"].reshape(1, cout, 1, 1)
              + params["b2"].reshape(1, cout, 1, 1))
    if stride == 1 and cin == cout:
        o = o + x
    return o


# --------------------------------------------------------------------------- #
# Deterministic parameter construction (folded BN, inference semantics)        #
# --------------------------------------------------------------------------- #
def init_params(key, *, cin, cout, expand, K, se_ratio):
    mid = cin * expand
    cse = max(1, cin // se_ratio)
    ks = jax.random.split(key, 20)

    def bn_fold(k0, k1, k2, k3, C):
        eps = 1e-5
        gamma = 1.0 + 0.1 * jax.random.normal(k0, (C,), jnp.float32)
        beta = 0.1 * jax.random.normal(k1, (C,), jnp.float32)
        mean = 0.1 * jax.random.normal(k2, (C,), jnp.float32)
        var = jax.random.uniform(k3, (C,), jnp.float32, 0.5, 1.5)
        scale = gamma / jnp.sqrt(var + eps)
        bias = beta - mean * scale
        return scale.reshape(C, 1), bias.reshape(C, 1)

    s0, b0 = bn_fold(ks[0], ks[1], ks[2], ks[3], mid)
    s1, b1 = bn_fold(ks[4], ks[5], ks[6], ks[7], mid)
    s2, b2 = bn_fold(ks[8], ks[9], ks[10], ks[11], cout)
    return {
        "w0t": 0.2 * jax.random.normal(ks[12], (mid, cin), jnp.float32),
        "s0": s0, "b0": b0,
        "wdw": 0.2 * jax.random.normal(ks[13], (mid, K * K), jnp.float32),
        "s1": s1, "b1": b1,
        "w_se1t": 0.2 * jax.random.normal(ks[14], (cse, mid), jnp.float32),
        "b_se1": 0.1 * jax.random.normal(ks[15], (cse, 1), jnp.float32),
        "w_se2t": 0.2 * jax.random.normal(ks[16], (mid, cse), jnp.float32),
        "b_se2": 0.1 * jax.random.normal(ks[17], (mid, 1), jnp.float32),
        "w2t": 0.2 * jax.random.normal(ks[18], (cout, mid), jnp.float32),
        "s2": s2, "b2": b2,
    }


if __name__ == "__main__":
    # Config: input_ch=8, output_ch=8, expand_ratio=4, kernel=3, stride=1,
    # se_ratio=4 -> middle_ch=32, SE hidden=2, skip connection active.
    cin, cout, expand, K, stride, se_ratio = 8, 8, 4, 3, 1, 4
    N, H, W = 2, 16, 16

    key = jax.random.PRNGKey(0)
    kx, kp = jax.random.split(key)
    x = jax.random.normal(kx, (N, cin, H, W), jnp.float32)
    params = init_params(kp, cin=cin, cout=cout, expand=expand, K=K, se_ratio=se_ratio)

    out = mbconv_forward(x, params, cin=cin, cout=cout, expand=expand, K=K, stride=stride)
    out = jax.block_until_ready(out)

    ref = ref_forward(x, params, cin=cin, cout=cout, expand=expand, K=K, stride=stride)
    assert out.shape == (N, cout, H // stride, W // stride), out.shape
    err = float(jnp.max(jnp.abs(out - ref)))
    assert jnp.allclose(out, ref, rtol=5e-2, atol=5e-2), err

    print("KERNEL_OK")
</pallas_src>

<mosaic_0001>
module attributes {stable_mosaic.version = 11 : i64} {
  func.func @_mbconv_kernel(%arg0: i32, %arg1: memref<1x8x256xbf16, #tpu.memory_space<vmem>>, %arg2: memref<32x8xbf16, #tpu.memory_space<vmem>>, %arg3: memref<32x1xf32, #tpu.memory_space<vmem>>, %arg4: memref<32x1xf32, #tpu.memory_space<vmem>>, %arg5: memref<32x9xf32, #tpu.memory_space<vmem>>, %arg6: memref<32x1xf32, #tpu.memory_space<vmem>>, %arg7: memref<32x1xf32, #tpu.memory_space<vmem>>, %arg8: memref<2x32xf32, #tpu.memory_space<vmem>>, %arg9: memref<2x1xf32, #tpu.memory_space<vmem>>, %arg10: memref<32x2xf32, #tpu.memory_space<vmem>>, %arg11: memref<32x1xf32, #tpu.memory_space<vmem>>, %arg12: memref<8x32xf32, #tpu.memory_space<vmem>>, %arg13: memref<8x1xf32, #tpu.memory_space<vmem>>, %arg14: memref<8x1xf32, #tpu.memory_space<vmem>>, %arg15: memref<1x8x256xf32, #tpu.memory_space<vmem>>, %arg16: memref<32x408xbf16, #tpu.memory_space<vmem>>) attributes {dimension_semantics = [#tpu.dimension_semantics<parallel>], iteration_bounds = array<i64: 2>, scalar_prefetch = 0 : i64, scratch_operands = 1 : i64, tpu.core_type = #tpu.core_type<tc>, window_params = [{transform_indices = @transform_0, window_bounds = array<i64: 1, 8, 256>}, {pipeline_mode = #tpu.pipeline_mode<synchronous>, transform_indices = @transform_1, window_bounds = array<i64: 32, 8>}, {pipeline_mode = #tpu.pipeline_mode<synchronous>, transform_indices = @transform_2, window_bounds = array<i64: 32, 1>}, {pipeline_mode = #tpu.pipeline_mode<synchronous>, transform_indices = @transform_3, window_bounds = array<i64: 32, 1>}, {pipeline_mode = #tpu.pipeline_mode<synchronous>, transform_indices = @transform_4, window_bounds = array<i64: 32, 9>}, {pipeline_mode = #tpu.pipeline_mode<synchronous>, transform_indices = @transform_5, window_bounds = array<i64: 32, 1>}, {pipeline_mode = #tpu.pipeline_mode<synchronous>, transform_indices = @transform_6, window_bounds = array<i64: 32, 1>}, {pipeline_mode = #tpu.pipeline_mode<synchronous>, transform_indices = @transform_7, window_bounds = array<i64: 2, 32>}, {pipeline_mode = #tpu.pipeline_mode<synchronous>, transform_indices = @transform_8, window_bounds = array<i64: 2, 1>}, {pipeline_mode = #tpu.pipeline_mode<synchronous>, transform_indices = @transform_9, window_bounds = array<i64: 32, 2>}, {pipeline_mode = #tpu.pipeline_mode<synchronous>, transform_indices = @transform_10, window_bounds = array<i64: 32, 1>}, {pipeline_mode = #tpu.pipeline_mode<synchronous>, transform_indices = @transform_11, window_bounds = array<i64: 8, 32>}, {pipeline_mode = #tpu.pipeline_mode<synchronous>, transform_indices = @transform_12, window_bounds = array<i64: 8, 1>}, {pipeline_mode = #tpu.pipeline_mode<synchronous>, transform_indices = @transform_13, window_bounds = array<i64: 8, 1>}, {transform_indices = @transform_14, window_bounds = array<i64: 1, 8, 256>}]} {
    %c0 = arith.constant 0 : index
    %c0_0 = arith.constant 0 : index
    %c0_1 = arith.constant 0 : index
    %0 = vector.load %arg1[%c0, %c0_0, %c0_1] : memref<1x8x256xbf16, #tpu.memory_space<vmem>>, vector<1x8x256xbf16>
    %1 = vector.shape_cast %0 : vector<1x8x256xbf16> to vector<8x256xbf16>
    %c0_2 = arith.constant 0 : index
    %c0_3 = arith.constant 0 : index
    %2 = vector.load %arg2[%c0_2, %c0_3] : memref<32x8xbf16, #tpu.memory_space<vmem>>, vector<32x8xbf16>
    %cst = arith.constant dense<0.000000e+00> : vector<32x256xf32>
    %3 = tpu.matmul %2, %1, %cst {dimension_numbers = #tpu.dot_dimension_numbers<[1], [0], [0], [1], [0, 0, 1, 1], [], []>} : vector<32x8xbf16>, vector<8x256xbf16>, vector<32x256xf32> -> vector<32x256xf32>
    %c0_4 = arith.constant 0 : index
    %c0_5 = arith.constant 0 : index
    %4 = vector.load %arg3[%c0_4, %c0_5] : memref<32x1xf32, #tpu.memory_space<vmem>>, vector<32x1xf32>
    %5 = vector.broadcast %4 : vector<32x1xf32> to vector<32x256xf32>
    %6 = arith.mulf %3, %5 : vector<32x256xf32>
    %c0_6 = arith.constant 0 : index
    %c0_7 = arith.constant 0 : index
    %7 = vector.load %arg4[%c0_6, %c0_7] : memref<32x1xf32, #tpu.memory_space<vmem>>, vector<32x1xf32>
    %8 = vector.broadcast %7 : vector<32x1xf32> to vector<32x256xf32>
    %9 = arith.addf %6, %8 : vector<32x256xf32>
    %10 = arith.negf %9 : vector<32x256xf32>
    %11 = math.exp %10 : vector<32x256xf32>
    %cst_8 = arith.constant 1.000000e+00 : f32
    %12 = vector.broadcast %cst_8 : f32 to vector<32x256xf32>
    %13 = arith.addf %12, %11 : vector<32x256xf32>
    %14 = arith.divf %12, %13 : vector<32x256xf32>
    %15 = arith.mulf %9, %14 : vector<32x256xf32>
    %cst_9 = arith.constant 0.000000e+00 : bf16
    %16 = vector.broadcast %cst_9 : bf16 to vector<32x16xbf16>
    %c0_10 = arith.constant 0 : index
    %c112 = arith.constant 112 : index
    %17 = vector.load %arg16[%c0_10, %c112] : memref<32x408xbf16, #tpu.memory_space<vmem>>, vector<32x16xbf16>
    tpu.vector_store %arg16[%c0_10, %c112], %16 {strides = array<i32>} : memref<32x408xbf16, #tpu.memory_space<vmem>>, vector<32x16xbf16>,
    %cst_11 = arith.constant 0.000000e+00 : bf16
    %18 = vector.broadcast %cst_11 : bf16 to vector<32x16xbf16>
    %c0_12 = arith.constant 0 : index
    %c384 = arith.constant 384 : index
    %19 = vector.load %arg16[%c0_12, %c384] : memref<32x408xbf16, #tpu.memory_space<vmem>>, vector<32x16xbf16>
    tpu.vector_store %arg16[%c0_12, %c384], %18 {strides = array<i32>} : memref<32x408xbf16, #tpu.memory_space<vmem>>, vector<32x16xbf16>,
    %20 = arith.truncf %15 : vector<32x256xf32> to vector<32x256xbf16>
    %c0_13 = arith.constant 0 : index
    %c128 = arith.constant 128 : index
    %21 = vector.load %arg16[%c0_13, %c128] : memref<32x408xbf16, #tpu.memory_space<vmem>>, vector<32x256xbf16>
    tpu.vector_store %arg16[%c0_13, %c128], %20 {strides = array<i32>} : memref<32x408xbf16, #tpu.memory_space<vmem>>, vector<32x256xbf16>,
    %c0_14 = arith.constant 0 : index
    %c0_15 = arith.constant 0 : index
    %22 = vector.load %arg5[%c0_14, %c0_15] : memref<32x9xf32, #tpu.memory_space<vmem>>, vector<32x9xf32>
    %23 = tpu.iota {dimensions = array<i32: 1>} : vector<1x256xi32>
    %c16_i32 = arith.constant 16 : i32
    %c0_i32 = arith.constant 0 : i32
    %24 = arith.cmpi eq, %c16_i32, %c0_i32 : i32
    %c1_i32 = arith.constant 1 : i32
    %25 = arith.select %24, %c1_i32, %c16_i32 : i32
    %26 = vector.broadcast %25 : i32 to vector<1x256xi32>
    %27 = arith.remsi %23, %26 : vector<1x256xi32>
    %c0_i32_16 = arith.constant 0 : i32
    %28 = vector.broadcast %c0_i32_16 : i32 to vector<1x256xi32>
    %29 = arith.cmpi ne, %27, %28 : vector<1x256xi32>
    %c0_i32_17 = arith.constant 0 : i32
    %30 = vector.broadcast %c0_i32_17 : i32 to vector<1x256xi32>
    %31 = arith.cmpi slt, %27, %30 : vector<1x256xi32>
    %c0_i32_18 = arith.constant 0 : i32
    %32 = arith.cmpi slt, %25, %c0_i32_18 : i32
    %33 = vector.broadcast %32 : i1 to vector<1x256xi1>
    %34 = vector.broadcast %33 : vector<1x256xi1> to vector<1x256xi1>
    %35 = arith.xori %31, %34 : vector<1x256xi1>
    %36 = arith.andi %35, %29 : vector<1x256xi1>
    %37 = vector.broadcast %25 : i32 to vector<1x256xi32>
    %38 = arith.addi %27, %37 : vector<1x256xi32>
    %39 = arith.select %36, %38, %27 : vector<1x256xi1>, vector<1x256xi32>
    %cst_19 = arith.constant 0.000000e+00 : f32
    %40 = vector.broadcast %cst_19 : f32 to vector<32x256xf32>
    %c0_20 = arith.constant 0 : index
    %c111 = arith.constant 111 : index
    %41 = vector.load %arg16[%c0_20, %c111] : memref<32x408xbf16, #tpu.memory_space<vmem>>, vector<32x256xbf16>
    %42 = arith.extf %41 : vector<32x256xbf16> to vector<32x256xf32>
    %c-1_i32 = arith.constant -1 : i32
    %43 = vector.broadcast %c-1_i32 : i32 to vector<1x256xi32>
    %44 = arith.addi %39, %43 : vector<1x256xi32>
    %c0_i32_21 = arith.constant 0 : i32
    %45 = vector.broadcast %c0_i32_21 : i32 to vector<1x256xi32>
    %46 = arith.cmpi sge, %44, %45 : vector<1x256xi32>
    %c-1_i32_22 = arith.constant -1 : i32
    %47 = vector.broadcast %c-1_i32_22 : i32 to vector<1x256xi32>
    %48 = arith.addi %39, %47 : vector<1x256xi32>
    %c16_i32_23 = arith.constant 16 : i32
    %49 = vector.broadcast %c16_i32_23 : i32 to vector<1x256xi32>
    %50 = arith.cmpi slt, %48, %49 : vector<1x256xi32>
    %51 = arith.andi %46, %50 : vector<1x256xi1>
    %cst_24 = arith.constant 0.000000e+00 : f32
    %52 = vector.shape_cast %51 : vector<1x256xi1> to vector<1x256xi1>
    %53 = vector.broadcast %52 : vector<1x256xi1> to vector<32x256xi1>
    %54 = vector.broadcast %cst_24 : f32 to vector<32x256xf32>
    %55 = arith.select %53, %42, %54 : vector<32x256xi1>, vector<32x256xf32>
    %56 = vector.extract_strided_slice %22 {offsets = [0, 0], sizes = [32, 1], strides = [1, 1]} : vector<32x9xf32> to vector<32x1xf32>
    %57 = vector.broadcast %56 : vector<32x1xf32> to vector<32x256xf32>
    %58 = arith.mulf %55, %57 : vector<32x256xf32>
    %59 = arith.addf %40, %58 : vector<32x256xf32>
    %c0_25 = arith.constant 0 : index
    %c112_26 = arith.constant 112 : index
    %60 = vector.load %arg16[%c0_25, %c112_26] : memref<32x408xbf16, #tpu.memory_space<vmem>>, vector<32x256xbf16>
    %61 = arith.extf %60 : vector<32x256xbf16> to vector<32x256xf32>
    %62 = vector.extract_strided_slice %22 {offsets = [0, 1], sizes = [32, 1], strides = [1, 1]} : vector<32x9xf32> to vector<32x1xf32>
    %63 = vector.broadcast %62 : vector<32x1xf32> to vector<32x256xf32>
    %64 = arith.mulf %61, %63 : vector<32x256xf32>
    %65 = arith.addf %59, %64 : vector<32x256xf32>
    %c0_27 = arith.constant 0 : index
    %c113 = arith.constant 113 : index
    %66 = vector.load %arg16[%c0_27, %c113] : memref<32x408xbf16, #tpu.memory_space<vmem>>, vector<32x256xbf16>
    %67 = arith.extf %66 : vector<32x256xbf16> to vector<32x256xf32>
    %c1_i32_28 = arith.constant 1 : i32
    %68 = vector.broadcast %c1_i32_28 : i32 to vector<1x256xi32>
    %69 = arith.addi %39, %68 : vector<1x256xi32>
    %c0_i32_29 = arith.constant 0 : i32
    %70 = vector.broadcast %c0_i32_29 : i32 to vector<1x256xi32>
    %71 = arith.cmpi sge, %69, %70 : vector<1x256xi32>
    %c1_i32_30 = arith.constant 1 : i32
    %72 = vector.broadcast %c1_i32_30 : i32 to vector<1x256xi32>
    %73 = arith.addi %39, %72 : vector<1x256xi32>
    %c16_i32_31 = arith.constant 16 : i32
    %74 = vector.broadcast %c16_i32_31 : i32 to vector<1x256xi32>
    %75 = arith.cmpi slt, %73, %74 : vector<1x256xi32>
    %76 = arith.andi %71, %75 : vector<1x256xi1>
    %cst_32 = arith.constant 0.000000e+00 : f32
    %77 = vector.shape_cast %76 : vector<1x256xi1> to vector<1x256xi1>
    %78 = vector.broadcast %77 : vector<1x256xi1> to vector<32x256xi1>
    %79 = vector.broadcast %cst_32 : f32 to vector<32x256xf32>
    %80 = arith.select %78, %67, %79 : vector<32x256xi1>, vector<32x256xf32>
    %81 = vector.extract_strided_slice %22 {offsets = [0, 2], sizes = [32, 1], strides = [1, 1]} : vector<32x9xf32> to vector<32x1xf32>
    %82 = vector.broadcast %81 : vector<32x1xf32> to vector<32x256xf32>
    %83 = arith.mulf %80, %82 : vector<32x256xf32>
    %84 = arith.addf %65, %83 : vector<32x256xf32>
    %c0_33 = arith.constant 0 : index
    %c127 = arith.constant 127 : index
    %85 = vector.load %arg16[%c0_33, %c127] : memref<32x408xbf16, #tpu.memory_space<vmem>>, vector<32x256xbf16>
    %86 = arith.extf %85 : vector<32x256xbf16> to vector<32x256xf32>
    %c-1_i32_34 = arith.constant -1 : i32
    %87 = vector.broadcast %c-1_i32_34 : i32 to vector<1x256xi32>
    %88 = arith.addi %39, %87 : vector<1x256xi32>
    %c0_i32_35 = arith.constant 0 : i32
    %89 = vector.broadcast %c0_i32_35 : i32 to vector<1x256xi32>
    %90 = arith.cmpi sge, %88, %89 : vector<1x256xi32>
    %c-1_i32_36 = arith.constant -1 : i32
    %91 = vector.broadcast %c-1_i32_36 : i32 to vector<1x256xi32>
    %92 = arith.addi %39, %91 : vector<1x256xi32>
    %c16_i32_37 = arith.constant 16 : i32
    %93 = vector.broadcast %c16_i32_37 : i32 to vector<1x256xi32>
    %94 = arith.cmpi slt, %92, %93 : vector<1x256xi32>
    %95 = arith.andi %90, %94 : vector<1x256xi1>
    %cst_38 = arith.constant 0.000000e+00 : f32
    %96 = vector.shape_cast %95 : vector<1x256xi1> to vector<1x256xi1>
    %97 = vector.broadcast %96 : vector<1x256xi1> to vector<32x256xi1>
    %98 = vector.broadcast %cst_38 : f32 to vector<32x256xf32>
    %99 = arith.select %97, %86, %98 : vector<32x256xi1>, vector<32x256xf32>
    %100 = vector.extract_strided_slice %22 {offsets = [0, 3], sizes = [32, 1], strides = [1, 1]} : vector<32x9xf32> to vector<32x1xf32>
    %101 = vector.broadcast %100 : vector<32x1xf32> to vector<32x256xf32>
    %102 = arith.mulf %99, %101 : vector<32x256xf32>
    %103 = arith.addf %84, %102 : vector<32x256xf32>
    %c0_39 = arith.constant 0 : index
    %c128_40 = arith.constant 128 : index
    %104 = vector.load %arg16[%c0_39, %c128_40] : memref<32x408xbf16, #tpu.memory_space<vmem>>, vector<32x256xbf16>
    %105 = arith.extf %104 : vector<32x256xbf16> to vector<32x256xf32>
    %106 = vector.extract_strided_slice %22 {offsets = [0, 4], sizes = [32, 1], strides = [1, 1]} : vector<32x9xf32> to vector<32x1xf32>
    %107 = vector.broadcast %106 : vector<32x1xf32> to vector<32x256xf32>
    %108 = arith.mulf %105, %107 : vector<32x256xf32>
    %109 = arith.addf %103, %108 : vector<32x256xf32>
    %c0_41 = arith.constant 0 : index
    %c129 = arith.constant 129 : index
    %110 = vector.load %arg16[%c0_41, %c129] : memref<32x408xbf16, #tpu.memory_space<vmem>>, vector<32x256xbf16>
    %111 = arith.extf %110 : vector<32x256xbf16> to vector<32x256xf32>
    %c1_i32_42 = arith.constant 1 : i32
    %112 = vector.broadcast %c1_i32_42 : i32 to vector<1x256xi32>
    %113 = arith.addi %39, %112 : vector<1x256xi32>
    %c0_i32_43 = arith.constant 0 : i32
    %114 = vector.broadcast %c0_i32_43 : i32 to vector<1x256xi32>
    %115 = arith.cmpi sge, %113, %114 : vector<1x256xi32>
    %c1_i32_44 = arith.constant 1 : i32
    %116 = vector.broadcast %c1_i32_44 : i32 to vector<1x256xi32>
    %117 = arith.addi %39, %116 : vector<1x256xi32>
    %c16_i32_45 = arith.constant 16 : i32
    %118 = vector.broadcast %c16_i32_45 : i32 to vector<1x256xi32>
    %119 = arith.cmpi slt, %117, %118 : vector<1x256xi32>
    %120 = arith.andi %115, %119 : vector<1x256xi1>
    %cst_46 = arith.constant 0.000000e+00 : f32
    %121 = vector.shape_cast %120 : vector<1x256xi1> to vector<1x256xi1>
    %122 = vector.broadcast %121 : vector<1x256xi1> to vector<32x256xi1>
    %123 = vector.broadcast %cst_46 : f32 to vector<32x256xf32>
    %124 = arith.select %122, %111, %123 : vector<32x256xi1>, vector<32x256xf32>
    %125 = vector.extract_strided_slice %22 {offsets = [0, 5], sizes = [32, 1], strides = [1, 1]} : vector<32x9xf32> to vector<32x1xf32>
    %126 = vector.broadcast %125 : vector<32x1xf32> to vector<32x256xf32>
    %127 = arith.mulf %124, %126 : vector<32x256xf32>
    %128 = arith.addf %109, %127 : vector<32x256xf32>
    %c0_47 = arith.constant 0 : index
    %c143 = arith.constant 143 : index
    %129 = vector.load %arg16[%c0_47, %c143] : memref<32x408xbf16, #tpu.memory_space<vmem>>, vector<32x256xbf16>
    %130 = arith.extf %129 : vector<32x256xbf16> to vector<32x256xf32>
    %c-1_i32_48 = arith.constant -1 : i32
    %131 = vector.broadcast %c-1_i32_48 : i32 to vector<1x256xi32>
    %132 = arith.addi %39, %131 : vector<1x256xi32>
    %c0_i32_49 = arith.constant 0 : i32
    %133 = vector.broadcast %c0_i32_49 : i32 to vector<1x256xi32>
    %134 = arith.cmpi sge, %132, %133 : vector<1x256xi32>
    %c-1_i32_50 = arith.constant -1 : i32
    %135 = vector.broadcast %c-1_i32_50 : i32 to vector<1x256xi32>
    %136 = arith.addi %39, %135 : vector<1x256xi32>
    %c16_i32_51 = arith.constant 16 : i32
    %137 = vector.broadcast %c16_i32_51 : i32 to vector<1x256xi32>
    %138 = arith.cmpi slt, %136, %137 : vector<1x256xi32>
    %139 = arith.andi %134, %138 : vector<1x256xi1>
    %cst_52 = arith.constant 0.000000e+00 : f32
    %140 = vector.shape_cast %139 : vector<1x256xi1> to vector<1x256xi1>
    %141 = vector.broadcast %140 : vector<1x256xi1> to vector<32x256xi1>
    %142 = vector.broadcast %cst_52 : f32 to vector<32x256xf32>
    %143 = arith.select %141, %130, %142 : vector<32x256xi1>, vector<32x256xf32>
    %144 = vector.extract_strided_slice %22 {offsets = [0, 6], sizes = [32, 1], strides = [1, 1]} : vector<32x9xf32> to vector<32x1xf32>
    %145 = vector.broadcast %144 : vector<32x1xf32> to vector<32x256xf32>
    %146 = arith.mulf %143, %145 : vector<32x256xf32>
    %147 = arith.addf %128, %146 : vector<32x256xf32>
    %c0_53 = arith.constant 0 : index
    %c144 = arith.constant 144 : index
    %148 = vector.load %arg16[%c0_53, %c144] : memref<32x408xbf16, #tpu.memory_space<vmem>>, vector<32x256xbf16>
    %149 = arith.extf %148 : vector<32x256xbf16> to vector<32x256xf32>
    %150 = vector.extract_strided_slice %22 {offsets = [0, 7], sizes = [32, 1], strides = [1, 1]} : vector<32x9xf32> to vector<32x1xf32>
    %151 = vector.broadcast %150 : vector<32x1xf32> to vector<32x256xf32>
    %152 = arith.mulf %149, %151 : vector<32x256xf32>
    %153 = arith.addf %147, %152 : vector<32x256xf32>
    %c0_54 = arith.constant 0 : index
    %c145 = arith.constant 145 : index
    %154 = vector.load %arg16[%c0_54, %c145] : memref<32x408xbf16, #tpu.memory_space<vmem>>, vector<32x256xbf16>
    %155 = arith.extf %154 : vector<32x256xbf16> to vector<32x256xf32>
    %c1_i32_55 = arith.constant 1 : i32
    %156 = vector.broadcast %c1_i32_55 : i32 to vector<1x256xi32>
    %157 = arith.addi %39, %156 : vector<1x256xi32>
    %c0_i32_56 = arith.constant 0 : i32
    %158 = vector.broadcast %c0_i32_56 : i32 to vector<1x256xi32>
    %159 = arith.cmpi sge, %157, %158 : vector<1x256xi32>
    %c1_i32_57 = arith.constant 1 : i32
    %160 = vector.broadcast %c1_i32_57 : i32 to vector<1x256xi32>
    %161 = arith.addi %39, %160 : vector<1x256xi32>
    %c16_i32_58 = arith.constant 16 : i32
    %162 = vector.broadcast %c16_i32_58 : i32 to vector<1x256xi32>
    %163 = arith.cmpi slt, %161, %162 : vector<1x256xi32>
    %164 = arith.andi %159, %163 : vector<1x256xi1>
    %cst_59 = arith.constant 0.000000e+00 : f32
    %165 = vector.shape_cast %164 : vector<1x256xi1> to vector<1x256xi1>
    %166 = vector.broadcast %165 : vector<1x256xi1> to vector<32x256xi1>
    %167 = vector.broadcast %cst_59 : f32 to vector<32x256xf32>
    %168 = arith.select %166, %155, %167 : vector<32x256xi1>, vector<32x256xf32>
    %169 = vector.extract_strided_slice %22 {offsets = [0, 8], sizes = [32, 1], strides = [1, 1]} : vector<32x9xf32> to vector<32x1xf32>
    %170 = vector.broadcast %169 : vector<32x1xf32> to vector<32x256xf32>
    %171 = arith.mulf %168, %170 : vector<32x256xf32>
    %172 = arith.addf %153, %171 : vector<32x256xf32>
    %c0_60 = arith.constant 0 : index
    %c0_61 = arith.constant 0 : index
    %173 = vector.load %arg6[%c0_60, %c0_61] : memref<32x1xf32, #tpu.memory_space<vmem>>, vector<32x1xf32>
    %174 = vector.broadcast %173 : vector<32x1xf32> to vector<32x256xf32>
    %175 = arith.mulf %172, %174 : vector<32x256xf32>
    %c0_62 = arith.constant 0 : index
    %c0_63 = arith.constant 0 : index
    %176 = vector.load %arg7[%c0_62, %c0_63] : memref<32x1xf32, #tpu.memory_space<vmem>>, vector<32x1xf32>
    %177 = vector.broadcast %176 : vector<32x1xf32> to vector<32x256xf32>
    %178 = arith.addf %175, %177 : vector<32x256xf32>
    %179 = arith.negf %178 : vector<32x256xf32>
    %180 = math.exp %179 : vector<32x256xf32>
    %cst_64 = arith.constant 1.000000e+00 : f32
    %181 = vector.broadcast %cst_64 : f32 to vector<32x256xf32>
    %182 = arith.addf %181, %180 : vector<32x256xf32>
    %183 = arith.divf %181, %182 : vector<32x256xf32>
    %184 = arith.mulf %178, %183 : vector<32x256xf32>
    %cst_65 = arith.constant dense<0.000000e+00> : vector<32xf32>
    %185 = vector.multi_reduction <add>, %184, %cst_65 [1] : vector<32x256xf32> to vector<32xf32>
    %186 = vector.shape_cast %185 : vector<32xf32> to vector<32x1xf32>
    %cst_66 = arith.constant 2.560000e+02 : f32
    %187 = vector.broadcast %cst_66 : f32 to vector<32x1xf32>
    %188 = arith.divf %186, %187 : vector<32x1xf32>
    %c0_67 = arith.constant 0 : index
    %c0_68 = arith.constant 0 : index
    %189 = vector.load %arg8[%c0_67, %c0_68] : memref<2x32xf32, #tpu.memory_space<vmem>>, vector<2x32xf32>
    %cst_69 = arith.constant dense<0.000000e+00> : vector<2x1xf32>
    %190 = tpu.matmul %189, %188, %cst_69 {dimension_numbers = #tpu.dot_dimension_numbers<[1], [0], [0], [1], [0, 0, 1, 1], [], []>} : vector<2x32xf32>, vector<32x1xf32>, vector<2x1xf32> -> vector<2x1xf32>
    %c0_70 = arith.constant 0 : index
    %c0_71 = arith.constant 0 : index
    %191 = vector.load %arg9[%c0_70, %c0_71] : memref<2x1xf32, #tpu.memory_space<vmem>>, vector<2x1xf32>
    %192 = arith.addf %190, %191 : vector<2x1xf32>
    %193 = arith.negf %192 : vector<2x1xf32>
    %194 = math.exp %193 : vector<2x1xf32>
    %cst_72 = arith.constant 1.000000e+00 : f32
    %195 = vector.broadcast %cst_72 : f32 to vector<2x1xf32>
    %196 = arith.addf %195, %194 : vector<2x1xf32>
    %197 = arith.divf %195, %196 : vector<2x1xf32>
    %198 = arith.mulf %192, %197 : vector<2x1xf32>
    %c0_73 = arith.constant 0 : index
    %c0_74 = arith.constant 0 : index
    %199 = vector.load %arg10[%c0_73, %c0_74] : memref<32x2xf32, #tpu.memory_space<vmem>>, vector<32x2xf32>
    %cst_75 = arith.constant dense<0.000000e+00> : vector<32x1xf32>
    %200 = tpu.matmul %199, %198, %cst_75 {dimension_numbers = #tpu.dot_dimension_numbers<[1], [0], [0], [1], [0, 0, 1, 1], [], []>} : vector<32x2xf32>, vector<2x1xf32>, vector<32x1xf32> -> vector<32x1xf32>
    %c0_76 = arith.constant 0 : index
    %c0_77 = arith.constant 0 : index
    %201 = vector.load %arg11[%c0_76, %c0_77] : memref<32x1xf32, #tpu.memory_space<vmem>>, vector<32x1xf32>
    %202 = arith.addf %200, %201 : vector<32x1xf32>
    %203 = arith.negf %202 : vector<32x1xf32>
    %204 = math.exp %203 : vector<32x1xf32>
    %cst_78 = arith.constant 1.000000e+00 : f32
    %205 = vector.broadcast %cst_78 : f32 to vector<32x1xf32>
    %206 = arith.addf %205, %204 : vector<32x1xf32>
    %207 = arith.divf %205, %206 : vector<32x1xf32>
    %c0_79 = arith.constant 0 : index
    %c0_80 = arith.constant 0 : index
    %208 = vector.load %arg12[%c0_79, %c0_80] : memref<8x32xf32, #tpu.memory_space<vmem>>, vector<8x32xf32>
    %209 = vector.broadcast %207 : vector<32x1xf32> to vector<32x256xf32>
    %210 = arith.mulf %184, %209 : vector<32x256xf32>
    %cst_81 = arith.constant dense<0.000000e+00> : vector<8x256xf32>
    %211 = tpu.matmul %208, %210, %cst_81 {dimension_numbers = #tpu.dot_dimension_numbers<[1], [0], [0], [1], [0, 0, 1, 1], [], []>} : vector<8x32xf32>, vector<32x256xf32>, vector<8x256xf32> -> vector<8x256xf32>
    %c0_82 = arith.constant 0 : index
    %c0_83 = arith.constant 0 : index
    %212 = vector.load %arg13[%c0_82, %c0_83] : memref<8x1xf32, #tpu.memory_space<vmem>>, vector<8x1xf32>
    %213 = vector.broadcast %212 : vector<8x1xf32> to vector<8x256xf32>
    %214 = arith.mulf %211, %213 : vector<8x256xf32>
    %c0_84 = arith.constant 0 : index
    %c0_85 = arith.constant 0 : index
    %215 = vector.load %arg14[%c0_84, %c0_85] : memref<8x1xf32, #tpu.memory_space<vmem>>, vector<8x1xf32>
    %216 = vector.broadcast %215 : vector<8x1xf32> to vector<8x256xf32>
    %217 = arith.addf %214, %216 : vector<8x256xf32>
    %218 = arith.negf %217 : vector<8x256xf32>
    %219 = math.exp %218 : vector<8x256xf32>
    %cst_86 = arith.constant 1.000000e+00 : f32
    %220 = vector.broadcast %cst_86 : f32 to vector<8x256xf32>
    %221 = arith.addf %220, %219 : vector<8x256xf32>
    %222 = arith.divf %220, %221 : vector<8x256xf32>
    %223 = arith.mulf %217, %222 : vector<8x256xf32>
    %224 = arith.extf %1 : vector<8x256xbf16> to vector<8x256xf32>
    %225 = arith.addf %223, %224 : vector<8x256xf32>
    %c0_87 = arith.constant 0 : index
    %c0_88 = arith.constant 0 : index
    %c0_89 = arith.constant 0 : index
    %226 = vector.load %arg15[%c0_87, %c0_88, %c0_89] : memref<1x8x256xf32, #tpu.memory_space<vmem>>, vector<1x8x256xf32>
    %227 = vector.shape_cast %226 : vector<1x8x256xf32> to vector<8x256xf32>
    %228 = vector.shape_cast %225 : vector<8x256xf32> to vector<1x8x256xf32>
    tpu.vector_store %arg15[%c0_87, %c0_88, %c0_89], %228 {strides = array<i32>} : memref<1x8x256xf32, #tpu.memory_space<vmem>>, vector<1x8x256xf32>,
    return
  }
  func.func @transform_0(%arg0: i32) -> (i32, i32, i32) {
    %c0_i32 = arith.constant 0 : i32
    %c0_i32_0 = arith.constant 0 : i32
    %c0_i32_1 = arith.constant 0 : i32
    return %arg0, %c0_i32, %c0_i32_0 : i32, i32, i32
  }
  func.func @transform_1(%arg0: i32) -> (i32, i32) {
    %c0_i32 = arith.constant 0 : i32
    %c0_i32_0 = arith.constant 0 : i32
    %c0_i32_1 = arith.constant 0 : i32
    return %c0_i32, %c0_i32_0 : i32, i32
  }
  func.func @transform_2(%arg0: i32) -> (i32, i32) {
    %c0_i32 = arith.constant 0 : i32
    %c0_i32_0 = arith.constant 0 : i32
    %c0_i32_1 = arith.constant 0 : i32
    return %c0_i32, %c0_i32_0 : i32, i32
  }
  func.func @transform_3(%arg0: i32) -> (i32, i32) {
    %c0_i32 = arith.constant 0 : i32
    %c0_i32_0 = arith.constant 0 : i32
    %c0_i32_1 = arith.constant 0 : i32
    return %c0_i32, %c0_i32_0 : i32, i32
  }
  func.func @transform_4(%arg0: i32) -> (i32, i32) {
    %c0_i32 = arith.constant 0 : i32
    %c0_i32_0 = arith.constant 0 : i32
    %c0_i32_1 = arith.constant 0 : i32
    return %c0_i32, %c0_i32_0 : i32, i32
  }
  func.func @transform_5(%arg0: i32) -> (i32, i32) {
    %c0_i32 = arith.constant 0 : i32
    %c0_i32_0 = arith.constant 0 : i32
    %c0_i32_1 = arith.constant 0 : i32
    return %c0_i32, %c0_i32_0 : i32, i32
  }
  func.func @transform_6(%arg0: i32) -> (i32, i32) {
    %c0_i32 = arith.constant 0 : i32
    %c0_i32_0 = arith.constant 0 : i32
    %c0_i32_1 = arith.constant 0 : i32
    return %c0_i32, %c0_i32_0 : i32, i32
  }
  func.func @transform_7(%arg0: i32) -> (i32, i32) {
    %c0_i32 = arith.constant 0 : i32
    %c0_i32_0 = arith.constant 0 : i32
    %c0_i32_1 = arith.constant 0 : i32
    return %c0_i32, %c0_i32_0 : i32, i32
  }
  func.func @transform_8(%arg0: i32) -> (i32, i32) {
    %c0_i32 = arith.constant 0 : i32
    %c0_i32_0 = arith.constant 0 : i32
    %c0_i32_1 = arith.constant 0 : i32
    return %c0_i32, %c0_i32_0 : i32, i32
  }
  func.func @transform_9(%arg0: i32) -> (i32, i32) {
    %c0_i32 = arith.constant 0 : i32
    %c0_i32_0 = arith.constant 0 : i32
    %c0_i32_1 = arith.constant 0 : i32
    return %c0_i32, %c0_i32_0 : i32, i32
  }
  func.func @transform_10(%arg0: i32) -> (i32, i32) {
    %c0_i32 = arith.constant 0 : i32
    %c0_i32_0 = arith.constant 0 : i32
    %c0_i32_1 = arith.constant 0 : i32
    return %c0_i32, %c0_i32_0 : i32, i32
  }
  func.func @transform_11(%arg0: i32) -> (i32, i32) {
    %c0_i32 = arith.constant 0 : i32
    %c0_i32_0 = arith.constant 0 : i32
    %c0_i32_1 = arith.constant 0 : i32
    return %c0_i32, %c0_i32_0 : i32, i32
  }
  func.func @transform_12(%arg0: i32) -> (i32, i32) {
    %c0_i32 = arith.constant 0 : i32
    %c0_i32_0 = arith.constant 0 : i32
    %c0_i32_1 = arith.constant 0 : i32
    return %c0_i32, %c0_i32_0 : i32, i32
  }
  func.func @transform_13(%arg0: i32) -> (i32, i32) {
    %c0_i32 = arith.constant 0 : i32
    %c0_i32_0 = arith.constant 0 : i32
    %c0_i32_1 = arith.constant 0 : i32
    return %c0_i32, %c0_i32_0 : i32, i32
  }
  func.func @transform_14(%arg0: i32) -> (i32, i32, i32) {
    %c0_i32 = arith.constant 0 : i32
    %c0_i32_0 = arith.constant 0 : i32
    %c0_i32_1 = arith.constant 0 : i32
    return %arg0, %c0_i32, %c0_i32_0 : i32, i32, i32
  }
}

</mosaic_0001>

<llo_original>
// kernel: tpu_custom_call.1
$region0: #{tpu_custom_call.1}
  #allocation0 [shape = 'u32[]', space=smem, size = 0x4, offset = 0x4, fixed_abs, tag = 'smem constant byte address 0x4 - core index']
  #allocation1 [shape = 'u32[144,128]{1,0:T(1,128)}', space=vmem, size = 0x12000, scoped, tag = 'internal scratch']
  #allocation2 [shape = 'bf16[32,408]{1,0:T(16,128)(2,1)}', space=vmem, size = 0x8000, scoped, tag = 'scratch operand']
  %s0 = inlined_call_operand.vmem [shape: bf16[2,8,256], index: 0, kind: input, shape index: {}]
  %s1 = inlined_call_operand.vmem [shape: bf16[32,8], index: 1, kind: input, shape index: {}]
  %s2 = inlined_call_operand.vmem [shape: f32[32,1], index: 2, kind: input, shape index: {}]
  %s3 = inlined_call_operand.vmem [shape: f32[32,1], index: 3, kind: input, shape index: {}]
  %s4 = inlined_call_operand.vmem [shape: f32[32,9], index: 4, kind: input, shape index: {}]
  %s5 = inlined_call_operand.vmem [shape: f32[32,1], index: 5, kind: input, shape index: {}]
  %s6 = inlined_call_operand.vmem [shape: f32[32,1], index: 6, kind: input, shape index: {}]
  %s7 = inlined_call_operand.vmem [shape: f32[2,32], index: 7, kind: input, shape index: {}]
  %s8 = inlined_call_operand.vmem [shape: f32[2,1], index: 8, kind: input, shape index: {}]
  %s9 = inlined_call_operand.vmem [shape: f32[32,2], index: 9, kind: input, shape index: {}]
  %s10 = inlined_call_operand.vmem [shape: f32[32,1], index: 10, kind: input, shape index: {}]
  %s11 = inlined_call_operand.vmem [shape: f32[8,32], index: 11, kind: input, shape index: {}]
  %s12 = inlined_call_operand.vmem [shape: f32[8,1], index: 12, kind: input, shape index: {}]
  %s13 = inlined_call_operand.vmem [shape: f32[8,1], index: 13, kind: input, shape index: {}]
  %s14 = inlined_call_operand.hbm [shape: f32[2,8,256], index: 14, kind: output, shape index: {}]
  %s15 = sld [smem:[#allocation0]]
  $region89: #{tpu_custom_call.1} parent=0
    _
  %s17 = ssub.s32 1, %s15
  %s18 = scalar_select 0, %s17, %s15
  $region1: #{tpu_custom_call.1} parent=0
    #allocation3 [shape = 'u8[16384]{0}', space=vmem, size = 0x4000, scoped, tag = 'output window, operand 0']
    #allocation4 [shape = 's32[2]{0}', space=sflag, size = 0x8, scoped, tag = 'scoped memory for tpu_custom_call.1']
    %19 = vsyncpa [#allocation4], 0
    %s20 = scalar_lea.sflag [#allocation4], 1
    %21 = vsyncpa %s20, 0
    loop: start=0, step=1, limit=4
    $region2: #{tpu_custom_call.1} parent=1 // loop_pre_header
      _
    $region3: #{tpu_custom_call.1} parent=1 // loop_header
      %s23 = sphi 0, %s27
      %p24 = scmp.ge.s32.totalorder %s23, 4
      %s33 = sphi 0, %s35
      %s36 = sphi 0, %s33
      %s37 = sphi 0, %s36
      %s53 = sphi 0, %s37
      %s57 = sphi 0, %s57
      %s59 = sphi 0, %s57
      %s60 = sphi 0, %s59
      %s74 = sphi 0, %s60
      %s78 = sphi 0, %s78
      %s80 = sphi 0, %s78
      %s81 = sphi 0, %s80
      %s95 = sphi 0, %s81
      %s99 = sphi 0, %s99
      %s101 = sphi 0, %s99
      %s102 = sphi 0, %s101
      %s116 = sphi 0, %s102
      %s120 = sphi 0, %s120
      %s122 = sphi 0, %s120
      %s123 = sphi 0, %s122
      %s137 = sphi 0, %s123
      %s141 = sphi 0, %s141
      %s143 = sphi 0, %s141
      %s144 = sphi 0, %s143
      %s158 = sphi 0, %s144
      %s162 = sphi 0, %s162
      %s164 = sphi 0, %s162
      %s165 = sphi 0, %s164
      %s179 = sphi 0, %s165
      %s183 = sphi 0, %s183
      %s185 = sphi 0, %s183
      %s186 = sphi 0, %s185
      %s200 = sphi 0, %s186
      %s204 = sphi 0, %s204
      %s206 = sphi 0, %s204
      %s207 = sphi 0, %s206
      %s221 = sphi 0, %s207
      %s225 = sphi 0, %s225
      %s227 = sphi 0, %s225
      %s228 = sphi 0, %s227
      %s242 = sphi 0, %s228
      %s246 = sphi 0, %s246
      %s248 = sphi 0, %s246
      %s249 = sphi 0, %s248
      %s263 = sphi 0, %s249
      %s267 = sphi 0, %s267
      %s269 = sphi 0, %s267
      %s270 = sphi 0, %s269
      %s284 = sphi 0, %s270
      %s288 = sphi 0, %s288
      %s290 = sphi 0, %s288
      %s291 = sphi 0, %s290
      %s305 = sphi 0, %s291
      %s309 = sphi 0, %s309
      %s311 = sphi 0, %s309
      %s312 = sphi 0, %s311
      %s326 = sphi 0, %s312
      %s332 = sphi 0, %s334
      %s335 = sphi 0, %s332
      %s336 = sphi 0, %s335
      %s352 = sphi 0, %s336
    $region4: #{tpu_custom_call.1} parent=1 // loop_header_branch
      %26 = sbr.rel (%p24) target = $region8
    $region5: #{tpu_custom_call.1} parent=1 // loop_body
      %s28 = ssub.s32 %s23, 1
      %s29 = ssub.s32 %s23, 2
      %s30 = sadd.s32 %s23, 1
      %s31 = ssub.s32 %s23, %s30
      %p32 = scmp.eq.s32.totalorder %s31, 0
      %s34 = sadd.s32 %s33, 1
      %s35 = scalar_select %p32, %s33, %s34
      %p38 = pneg %p32
      %p39 = scmp.eq.s32.totalorder %s23, 1
      %p40 = por %p38, %p39
      %p41 = scmp.ne.s32.totalorder %s33, %s36
      %p42 = scmp.eq.s32.totalorder %s23, 0
      %p43 = por %p41, %p42
      %p44 = scmp.ne.s32.totalorder %s33, %s36
      %p45 = scmp.eq.s32.totalorder %s28, 1
      %p46 = por %p44, %p45
      %p47 = scmp.ne.s32.totalorder %s36, %s37
      %p48 = scmp.eq.s32.totalorder %s28, 0
      %p49 = por %p47, %p48
      %p50 = scmp.ne.s32.totalorder %s36, %s37
      %p51 = scmp.eq.s32.totalorder %s29, 1
      %p52 = por %p50, %p51
      %p54 = scmp.ne.s32.totalorder %s37, %s53
      %p55 = scmp.eq.s32.totalorder %s29, 0
      %p56 = por %p54, %p55
      %s58 = sadd.s32 %s57, 1
      %p61 = scmp.eq.s32.totalorder %s23, 1
      %p62 = scmp.ne.s32.totalorder %s57, %s59
      %p63 = scmp.eq.s32.totalorder %s23, 0
      %p64 = por %p62, %p63
      %p65 = scmp.ne.s32.totalorder %s57, %s59
      %p66 = scmp.eq.s32.totalorder %s28, 1
      %p67 = por %p65, %p66
      %p68 = scmp.ne.s32.totalorder %s59, %s60
      %p69 = scmp.eq.s32.totalorder %s28, 0
      %p70 = por %p68, %p69
      %p71 = scmp.ne.s32.totalorder %s59, %s60
      %p72 = scmp.eq.s32.totalorder %s29, 1
      %p73 = por %p71, %p72
      %p75 = scmp.ne.s32.totalorder %s60, %s74
      %p76 = scmp.eq.s32.totalorder %s29, 0
      %p77 = por %p75, %p76
      %s79 = sadd.s32 %s78, 1
      %p82 = scmp.eq.s32.totalorder %s23, 1
      %p83 = scmp.ne.s32.totalorder %s78, %s80
      %p84 = scmp.eq.s32.totalorder %s23, 0
      %p85 = por %p83, %p84
      %p86 = scmp.ne.s32.totalorder %s78, %s80
      %p87 = scmp.eq.s32.totalorder %s28, 1
      %p88 = por %p86, %p87
      %p89 = scmp.ne.s32.totalorder %s80, %s81
      %p90 = scmp.eq.s32.totalorder %s28, 0
      %p91 = por %p89, %p90
      %p92 = scmp.ne.s32.totalorder %s80, %s81
      %p93 = scmp.eq.s32.totalorder %s29, 1
      %p94 = por %p92, %p93
      %p96 = scmp.ne.s32.totalorder %s81, %s95
      %p97 = scmp.eq.s32.totalorder %s29, 0
      %p98 = por %p96, %p97
      %s100 = sadd.s32 %s99, 1
      %p103 = scmp.eq.s32.totalorder %s23, 1
      %p104 = scmp.ne.s32.totalorder %s99, %s101
      %p105 = scmp.eq.s32.totalorder %s23, 0
      %p106 = por %p104, %p105
      %p107 = scmp.ne.s32.totalorder %s99, %s101
      %p108 = scmp.eq.s32.totalorder %s28, 1
      %p109 = por %p107, %p108
      %p110 = scmp.ne.s32.totalorder %s101, %s102
      %p111 = scmp.eq.s32.totalorder %s28, 0
      %p112 = por %p110, %p111
      %p113 = scmp.ne.s32.totalorder %s101, %s102
      %p114 = scmp.eq.s32.totalorder %s29, 1
      %p115 = por %p113, %p114
      %p117 = scmp.ne.s32.totalorder %s102, %s116
      %p118 = scmp.eq.s32.totalorder %s29, 0
      %p119 = por %p117, %p118
      %s121 = sadd.s32 %s120, 1
      %p124 = scmp.eq.s32.totalorder %s23, 1
      %p125 = scmp.ne.s32.totalorder %s120, %s122
      %p126 = scmp.eq.s32.totalorder %s23, 0
      %p127 = por %p125, %p126
      %p128 = scmp.ne.s32.totalorder %s120, %s122
      %p129 = scmp.eq.s32.totalorder %s28, 1
      %p130 = por %p128, %p129
      %p131 = scmp.ne.s32.totalorder %s122, %s123
      %p132 = scmp.eq.s32.totalorder %s28, 0
      %p133 = por %p131, %p132
      %p134 = scmp.ne.s32.totalorder %s122, %s123
      %p135 = scmp.eq.s32.totalorder %s29, 1
      %p136 = por %p134, %p135
      %p138 = scmp.ne.s32.totalorder %s123, %s137
      %p139 = scmp.eq.s32.totalorder %s29, 0
      %p140 = por %p138, %p139
      %s142 = sadd.s32 %s141, 1
      %p145 = scmp.eq.s32.totalorder %s23, 1
      %p146 = scmp.ne.s32.totalorder %s141, %s143
      %p147 = scmp.eq.s32.totalorder %s23, 0
      %p148 = por %p146, %p147
      %p149 = scmp.ne.s32.totalorder %s141, %s143
      %p150 = scmp.eq.s32.totalorder %s28, 1
      %p151 = por %p149, %p150
      %p152 = scmp.ne.s32.totalorder %s143, %s144
      %p153 = scmp.eq.s32.totalorder %s28, 0
      %p154 = por %p152, %p153
      %p155 = scmp.ne.s32.totalorder %s143, %s144
      %p156 = scmp.eq.s32.totalorder %s29, 1
      %p157 = por %p155, %p156
      %p159 = scmp.ne.s32.totalorder %s144, %s158
      %p160 = scmp.eq.s32.totalorder %s29, 0
      %p161 = por %p159, %p160
      %s163 = sadd.s32 %s162, 1
      %p166 = scmp.eq.s32.totalorder %s23, 1
      %p167 = scmp.ne.s32.totalorder %s162, %s164
      %p168 = scmp.eq.s32.totalorder %s23, 0
      %p169 = por %p167, %p168
      %p170 = scmp.ne.s32.totalorder %s162, %s164
      %p171 = scmp.eq.s32.totalorder %s28, 1
      %p172 = por %p170, %p171
      %p173 = scmp.ne.s32.totalorder %s164, %s165
      %p174 = scmp.eq.s32.totalorder %s28, 0
      %p175 = por %p173, %p174
      %p176 = scmp.ne.s32.totalorder %s164, %s165
      %p177 = scmp.eq.s32.totalorder %s29, 1
      %p178 = por %p176, %p177
      %p180 = scmp.ne.s32.totalorder %s165, %s179
      %p181 = scmp.eq.s32.totalorder %s29, 0
      %p182 = por %p180, %p181
      %s184 = sadd.s32 %s183, 1
      %p187 = scmp.eq.s32.totalorder %s23, 1
      %p188 = scmp.ne.s32.totalorder %s183, %s185
      %p189 = scmp.eq.s32.totalorder %s23, 0
      %p190 = por %p188, %p189
      %p191 = scmp.ne.s32.totalorder %s183, %s185
      %p192 = scmp.eq.s32.totalorder %s28, 1
      %p193 = por %p191, %p192
      %p194 = scmp.ne.s32.totalorder %s185, %s186
      %p195 = scmp.eq.s32.totalorder %s28, 0
      %p196 = por %p194, %p195
      %p197 = scmp.ne.s32.totalorder %s185, %s186
      %p198 = scmp.eq.s32.totalorder %s29, 1
      %p199 = por %p197, %p198
      %p201 = scmp.ne.s32.totalorder %s186, %s200
      %p202 = scmp.eq.s32.totalorder %s29, 0
      %p203 = por %p201, %p202
      %s205 = sadd.s32 %s204, 1
      %p208 = scmp.eq.s32.totalorder %s23, 1
      %p209 = scmp.ne.s32.totalorder %s204, %s206
      %p210 = scmp.eq.s32.totalorder %s23, 0
      %p211 = por %p209, %p210
      %p212 = scmp.ne.s32.totalorder %s204, %s206
      %p213 = scmp.eq.s32.totalorder %s28, 1
      %p214 = por %p212, %p213
      %p215 = scmp.ne.s32.totalorder %s206, %s207
      %p216 = scmp.eq.s32.totalorder %s28, 0
      %p217 = por %p215, %p216
      %p218 = scmp.ne.s32.totalorder %s206, %s207
      %p219 = scmp.eq.s32.totalorder %s29, 1
      %p220 = por %p218, %p219
      %p222 = scmp.ne.s32.totalorder %s207, %s221
      %p223 = scmp.eq.s32.totalorder %s29, 0
      %p224 = por %p222, %p223
      %s226 = sadd.s32 %s225, 1
      %p229 = scmp.eq.s32.totalorder %s23, 1
      %p230 = scmp.ne.s32.totalorder %s225, %s227
      %p231 = scmp.eq.s32.totalorder %s23, 0
      %p232 = por %p230, %p231
      %p233 = scmp.ne.s32.totalorder %s225, %s227
      %p234 = scmp.eq.s32.totalorder %s28, 1
      %p235 = por %p233, %p234
      %p236 = scmp.ne.s32.totalorder %s227, %s228
      %p237 = scmp.eq.s32.totalorder %s28, 0
      %p238 = por %p236, %p237
      %p239 = scmp.ne.s32.totalorder %s227, %s228
      %p240 = scmp.eq.s32.totalorder %s29, 1
      %p241 = por %p239, %p240
      %p243 = scmp.ne.s32.totalorder %s228, %s242
      %p244 = scmp.eq.s32.totalorder %s29, 0
      %p245 = por %p243, %p244
      %s247 = sadd.s32 %s246, 1
      %p250 = scmp.eq.s32.totalorder %s23, 1
      %p251 = scmp.ne.s32.totalorder %s246, %s248
      %p252 = scmp.eq.s32.totalorder %s23, 0
      %p253 = por %p251, %p252
      %p254 = scmp.ne.s32.totalorder %s246, %s248
      %p255 = scmp.eq.s32.totalorder %s28, 1
      %p256 = por %p254, %p255
      %p257 = scmp.ne.s32.totalorder %s248, %s249
      %p258 = scmp.eq.s32.totalorder %s28, 0
      %p259 = por %p257, %p258
      %p260 = scmp.ne.s32.totalorder %s248, %s249
      %p261 = scmp.eq.s32.totalorder %s29, 1
      %p262 = por %p260, %p261
      %p264 = scmp.ne.s32.totalorder %s249, %s263
      %p265 = scmp.eq.s32.totalorder %s29, 0
      %p266 = por %p264, %p265
      %s268 = sadd.s32 %s267, 1
      %p271 = scmp.eq.s32.totalorder %s23, 1
      %p272 = scmp.ne.s32.totalorder %s267, %s269
      %p273 = scmp.eq.s32.totalorder %s23, 0
      %p274 = por %p272, %p273
      %p275 = scmp.ne.s32.totalorder %s267, %s269
      %p276 = scmp.eq.s32.totalorder %s28, 1
      %p277 = por %p275, %p276
      %p278 = scmp.ne.s32.totalorder %s269, %s270
      %p279 = scmp.eq.s32.totalorder %s28, 0
      %p280 = por %p278, %p279
      %p281 = scmp.ne.s32.totalorder %s269, %s270
      %p282 = scmp.eq.s32.totalorder %s29, 1
      %p283 = por %p281, %p282
      %p285 = scmp.ne.s32.totalorder %s270, %s284
      %p286 = scmp.eq.s32.totalorder %s29, 0
      %p287 = por %p285, %p286
      %s289 = sadd.s32 %s288, 1
      %p292 = scmp.eq.s32.totalorder %s23, 1
      %p293 = scmp.ne.s32.totalorder %s288, %s290
      %p294 = scmp.eq.s32.totalorder %s23, 0
      %p295 = por %p293, %p294
      %p296 = scmp.ne.s32.totalorder %s288, %s290
      %p297 = scmp.eq.s32.totalorder %s28, 1
      %p298 = por %p296, %p297
      %p299 = scmp.ne.s32.totalorder %s290, %s291
      %p300 = scmp.eq.s32.totalorder %s28, 0
      %p301 = por %p299, %p300
      %p302 = scmp.ne.s32.totalorder %s290, %s291
      %p303 = scmp.eq.s32.totalorder %s29, 1
      %p304 = por %p302, %p303
      %p306 = scmp.ne.s32.totalorder %s291, %s305
      %p307 = scmp.eq.s32.totalorder %s29, 0
      %p308 = por %p306, %p307
      %s310 = sadd.s32 %s309, 1
      %p313 = scmp.eq.s32.totalorder %s23, 1
      %p314 = scmp.ne.s32.totalorder %s309, %s311
      %p315 = scmp.eq.s32.totalorder %s23, 0
      %p316 = por %p314, %p315
      %p317 = scmp.ne.s32.totalorder %s309, %s311
      %p318 = scmp.eq.s32.totalorder %s28, 1
      %p319 = por %p317, %p318
      %p320 = scmp.ne.s32.totalorder %s311, %s312
      %p321 = scmp.eq.s32.totalorder %s28, 0
      %p322 = por %p320, %p321
      %p323 = scmp.ne.s32.totalorder %s311, %s312
      %p324 = scmp.eq.s32.totalorder %s29, 1
      %p325 = por %p323, %p324
      %p327 = scmp.ne.s32.totalorder %s312, %s326
      %p328 = scmp.eq.s32.totalorder %s29, 0
      %p329 = por %p327, %p328
      %s330 = ssub.s32 %s23, %s30
      %p331 = scmp.eq.s32.totalorder %s330, 0
      %s333 = sadd.s32 %s332, 1
      %s334 = scalar_select %p331, %s332, %s333
      %p337 = pneg %p331
      %p338 = scmp.eq.s32.totalorder %s23, 1
      %p339 = por %p337, %p338
      %p340 = scmp.ne.s32.totalorder %s332, %s335
      %p341 = scmp.eq.s32.totalorder %s23, 0
      %p342 = por %p340, %p341
      %p343 = scmp.ne.s32.totalorder %s332, %s335
      %p344 = scmp.eq.s32.totalorder %s28, 1
      %p345 = por %p343, %p344
      %p346 = scmp.ne.s32.totalorder %s335, %s336
      %p347 = scmp.eq.s32.totalorder %s28, 0
      %p348 = por %p346, %p347
      %p349 = scmp.ne.s32.totalorder %s335, %s336
      %p350 = scmp.eq.s32.totalorder %s29, 1
      %p351 = por %p349, %p350
      %p353 = scmp.ne.s32.totalorder %s336, %s352
      %p354 = scmp.eq.s32.totalorder %s29, 0
      %p355 = por %p353, %p354
      %p356 = scmp.le.s32.totalorder 1, %s23
      %p357 = scmp.lt.s32.totalorder %s23, 3
      %p358 = pnand %p356, %p357
      %p359 = pneg %p358
      // Predicated region
      $region9: #{tpu_custom_call.1} parent=5 // pred_check
        _
      $region10: #{tpu_custom_call.1} parent=5 // pred_check_branch
        %361 = sbr.rel (%p358) target = $region12
      $region11: #{tpu_custom_call.1} parent=5 // pred_region
        %s362 = ssub.s32 %s23, 1
        // Predicated region
        $region13: #{tpu_custom_call.1} parent=11 // pred_check
          %p363 = pneg %p70
        $region14: #{tpu_custom_call.1} parent=11 // pred_check_branch
          %365 = sbr.rel (%p363) target = $region16
        $region15: #{tpu_custom_call.1} parent=11 // pred_region
          _
        $region16: #{tpu_custom_call.1} parent=11 // pred_fallthru
          _
        // Predicated region
        $region17: #{tpu_custom_call.1} parent=11 // pred_check
          %p366 = pneg %p91
        $region18: #{tpu_custom_call.1} parent=11 // pred_check_branch
          %368 = sbr.rel (%p366) target = $region20
        $region19: #{tpu_custom_call.1} parent=11 // pred_region
          _
        $region20: #{tpu_custom_call.1} parent=11 // pred_fallthru
          _
        // Predicated region
        $region21: #{tpu_custom_call.1} parent=11 // pred_check
          %p369 = pneg %p112
        $region22: #{tpu_custom_call.1} parent=11 // pred_check_branch
          %371 = sbr.rel (%p369) target = $region24
        $region23: #{tpu_custom_call.1} parent=11 // pred_region
          _
        $region24: #{tpu_custom_call.1} parent=11 // pred_fallthru
          _
        // Predicated region
        $region25: #{tpu_custom_call.1} parent=11 // pred_check
          %p372 = pneg %p133
        $region26: #{tpu_custom_call.1} parent=11 // pred_check_branch
          %374 = sbr.rel (%p372) target = $region28
        $region27: #{tpu_custom_call.1} parent=11 // pred_region
          _
        $region28: #{tpu_custom_call.1} parent=11 // pred_fallthru
          _
        // Predicated region
        $region29: #{tpu_custom_call.1} parent=11 // pred_check
          %p375 = pneg %p154
        $region30: #{tpu_custom_call.1} parent=11 // pred_check_branch
          %377 = sbr.rel (%p375) target = $region32
        $region31: #{tpu_custom_call.1} parent=11 // pred_region
          _
        $region32: #{tpu_custom_call.1} parent=11 // pred_fallthru
          _
        // Predicated region
        $region33: #{tpu_custom_call.1} parent=11 // pred_check
          %p378 = pneg %p175
        $region34: #{tpu_custom_call.1} parent=11 // pred_check_branch
          %380 = sbr.rel (%p378) target = $region36
        $region35: #{tpu_custom_call.1} parent=11 // pred_region
          _
        $region36: #{tpu_custom_call.1} parent=11 // pred_fallthru
          _
        // Predicated region
        $region37: #{tpu_custom_call.1} parent=11 // pred_check
          %p381 = pneg %p196
        $region38: #{tpu_custom_call.1} parent=11 // pred_check_branch
          %383 = sbr.rel (%p381) target = $region40
        $region39: #{tpu_custom_call.1} parent=11 // pred_region
          _
        $region40: #{tpu_custom_call.1} parent=11 // pred_fallthru
          _
        // Predicated region
        $region41: #{tpu_custom_call.1} parent=11 // pred_check
          %p384 = pneg %p217
        $region42: #{tpu_custom_call.1} parent=11 // pred_check_branch
          %386 = sbr.rel (%p384) target = $region44
        $region43: #{tpu_custom_call.1} parent=11 // pred_region
          _
        $region44: #{tpu_custom_call.1} parent=11 // pred_fallthru
          _
        // Predicated region
        $region45: #{tpu_custom_call.1} parent=11 // pred_check
          %p387 = pneg %p238
        $region46: #{tpu_custom_call.1} parent=11 // pred_check_branch
          %389 = sbr.rel (%p387) target = $region48
        $region47: #{tpu_custom_call.1} parent=11 // pred_region
          _
        $region48: #{tpu_custom_call.1} parent=11 // pred_fallthru
          _
        // Predicated region
        $region49: #{tpu_custom_call.1} parent=11 // pred_check
          %p390 = pneg %p259
        $region50: #{tpu_custom_call.1} parent=11 // pred_check_branch
          %392 = sbr.rel (%p390) target = $region52
        $region51: #{tpu_custom_call.1} parent=11 // pred_region
          _
        $region52: #{tpu_custom_call.1} parent=11 // pred_fallthru
          _
        // Predicated region
        $region53: #{tpu_custom_call.1} parent=11 // pred_check
          %p393 = pneg %p280
        $region54: #{tpu_custom_call.1} parent=11 // pred_check_branch
          %395 = sbr.rel (%p393) target = $region56
        $region55: #{tpu_custom_call.1} parent=11 // pred_region
          _
        $region56: #{tpu_custom_call.1} parent=11 // pred_fallthru
          _
        // Predicated region
        $region57: #{tpu_custom_call.1} parent=11 // pred_check
          %p396 = pneg %p301
        $region58: #{tpu_custom_call.1} parent=11 // pred_check_branch
          %398 = sbr.rel (%p396) target = $region60
        $region59: #{tpu_custom_call.1} parent=11 // pred_region
          _
        $region60: #{tpu_custom_call.1} parent=11 // pred_fallthru
          _
        // Predicated region
        $region61: #{tpu_custom_call.1} parent=11 // pred_check
          %p399 = pneg %p322
        $region62: #{tpu_custom_call.1} parent=11 // pred_check_branch
          %401 = sbr.rel (%p399) target = $region64
        $region63: #{tpu_custom_call.1} parent=11 // pred_region
          _
        $region64: #{tpu_custom_call.1} parent=11 // pred_fallthru
          _
      $region12: #{tpu_custom_call.1} parent=5 // pred_fallthru
        _
      %p402 = scmp.lt.s32.totalorder %s23, 2
      // Predicated region
      $region65: #{tpu_custom_call.1} parent=5 // pred_check
        %p403 = pneg %p402
      $region66: #{tpu_custom_call.1} parent=5 // pred_check_branch
        %405 = sbr.rel (%p403) target = $region68
      $region67: #{tpu_custom_call.1} parent=5 // pred_region
        // Predicated region
        $region69: #{tpu_custom_call.1} parent=67 // pred_check
          %p406 = pneg %p43
        $region70: #{tpu_custom_call.1} parent=67 // pred_check_branch
          %408 = sbr.rel (%p406) target = $region72
        $region71: #{tpu_custom_call.1} parent=67 // pred_region
          %p409 = scmp.lt.s32.totalorder %s23, 1
          %s410 = scalar_select %p409, %s23, 1
          %s411 = smul.addr %s410, 2
          %s412 = smul.addr %s411, 4
          %s413 = scalar_lea.vmem %s0, %s412
        $region72: #{tpu_custom_call.1} parent=67 // pred_fallthru
          _
      $region68: #{tpu_custom_call.1} parent=5 // pred_fallthru
        _
      %p414 = scmp.le.s32.totalorder 1, %s23
      %p415 = scmp.lt.s32.totalorder %s23, 3
      %p416 = pnand %p414, %p415
      %p417 = pneg %p416
      // Predicated region
      $region73: #{tpu_custom_call.1} parent=5 // pred_check
        _
      $region74: #{tpu_custom_call.1} parent=5 // pred_check_branch
        %419 = sbr.rel (%p416) target = $region76
      $region75: #{tpu_custom_call.1} parent=5 // pred_region
        %s420 = ssub.s32 %s23, 1
        %p421 = scmp.lt.s32.totalorder %s28, 1
        %s422 = scalar_select %p421, %s28, 1
        %s423 = smul.addr %s422, 2
        %s424 = smul.addr %s423, 4
        %s425 = scalar_lea.vmem %s0, %s424
        %p426 = pneg %p49
        %p427 = pneg %p46
        %p428 = pneg %p70
        %p429 = pneg %p67
        %p430 = pneg %p91
        %p431 = pneg %p88
        %p432 = pneg %p112
        %p433 = pneg %p109
        %p434 = pneg %p133
        %p435 = pneg %p130
        %p436 = pneg %p154
        %p437 = pneg %p151
        %p438 = pneg %p175
        %p439 = pneg %p172
        %p440 = pneg %p196
        %p441 = pneg %p193
        %p442 = pneg %p217
        %p443 = pneg %p214
        %p444 = pneg %p238
        %p445 = pneg %p235
        %p446 = pneg %p259
        %p447 = pneg %p256
        %p448 = pneg %p280
        %p449 = pneg %p277
        %p450 = pneg %p301
        %p451 = pneg %p298
        %p452 = pneg %p322
        %p453 = pneg %p319
        %p454 = pneg %p348
        %p455 = pneg %p345
        %s456 = sand.u32 %s335, 1
        %s457 = scalar_lea.sflag [#allocation4], %s456
        %s458 = sand.u32 %s335, 1
        %s459 = smul.addr %s458, 16
        %s460 = scalar_lea.vmem [#allocation3], %s459
        %p461 = scmp.lt.s32.totalorder %s28, 1
        %s462 = scalar_select %p461, %s28, 1
        %s463 = smul.addr %s462, 2
        %s464 = smul.addr %s463, 4
        %s465 = scalar_lea.vmem %s0, %s464
        %v467 = vld [vmem:[%s465] sm:$0xff]
        %v468 = vld [vmem:[%s1] sm:$0xf]
        %v469 = vld [vmem:[%s1 + $0x4] sm:$0xf]
        %v470 = vld [vmem:[%s1 + $0x8] sm:$0xf]
        %v471 = vld [vmem:[%s1 + $0xc] sm:$0xf]
        %v476 = vunpack.c.l.b16 %v468
        %v477 = vunpack.c.l.b16 %v469
        %v478 = vunpack.c.l.b16 %v470
        %v479 = vunpack.c.l.b16 %v471
        %v480 = vpack.c.b16 %v477, %v476
        %v481 = vpack.c.b16 %v479, %v478
        %v483 = vunpack.c.l.b16 %v467
        %v484 = vunpack.c.h.b16 %v467
        %v485 = vpack.c.b16 %v483, %v483
        %v486 = vpack.c.b16 %v484, %v484
        %vm487 = vcmask 64512
        %v489 = vsel %vm487, %v480, 0
        %v492 = vsel %vm487, %v481, 0
        %vm494 = vcmask 1043456
        %v496 = vsel %vm494, %v485, 0
        %v499 = vsel %vm494, %v486, 0
        %501 = vmatprep.subr.bf16.mxu0 %v499
        %502 = vmatpush1.bf16.msra.mxu0 %v496
        %503 = vmatprep.subr.bf16.mxu0 0
        %504 = vmatpush1.bf16.msra.mxu0 0
        %505 = vmatprep.subr.bf16.mxu0 0
        %506 = vmatpush1.bf16.msra.mxu0 0
        %507 = vmatprep.subr.bf16.mxu0 0
        %508 = vmatpush1.bf16.msra.mxu0 0
        %509 = vmatprep.subr.bf16.mxu0 0
        %510 = vmatpush1.bf16.msra.mxu0 0
        %511 = vmatprep.subr.bf16.mxu0 0
        %512 = vmatpush1.bf16.msra.mxu0 0
        %513 = vmatprep.subr.bf16.mxu0 0
        %514 = vmatpush1.bf16.msra.mxu0 0
        %515 = vmatprep.subr.bf16.mxu0 0
        %516 = vmatpush1.bf16.msra.mxu0 0
        %517 = vmatprep.subr.bf16.mxu0 0
        %518 = vmatpush1.bf16.msra.mxu0 0
        %519 = vmatprep.subr.bf16.mxu0 0
        %520 = vmatpush1.bf16.msra.mxu0 0
        %521 = vmatprep.subr.bf16.mxu0 0
        %522 = vmatpush1.bf16.msra.mxu0 0
        %523 = vmatprep.subr.bf16.mxu0 0
        %524 = vmatpush1.bf16.msra.mxu0 0
        %525 = vmatprep.subr.bf16.mxu0 0
        %526 = vmatpush1.bf16.msra.mxu0 0
        %527 = vmatprep.subr.bf16.mxu0 0
        %528 = vmatpush1.bf16.msra.mxu0 0
        %529 = vmatprep.subr.bf16.mxu0 0
        %530 = vmatpush1.bf16.msra.mxu0 0
        %531 = vmatprep.subr.bf16.mxu0 0
        %532 = vmatpush1.bf16.msra.mxu0 0
        %533 = vmatprep.mubr.bf16.mxu0 0
        %534 = vmatmul.mubr.bf16.gmra.mrb[0].mxu0 %v489
        %v535 = vpop.f32.mrb[0].mxu0
        %v536 = vadd.f32 0.0, %v535
        %v537 = vpop.f32.mrb[0].mxu0
        %v538 = vadd.f32 0.0, %v537
        %v539 = vpop.f32.mrb[0].mxu0
        %v540 = vadd.f32 0.0, %v539
        %v541 = vpop.f32.mrb[0].mxu0
        %v542 = vadd.f32 0.0, %v541
        %543 = vmatprep.mubr.bf16.mxu0 0
        %544 = vmatmul.mubr.bf16.gmra.mrb[0].mxu0 %v492
        %v545 = vpop.f32.mrb[0].mxu0
        %v546 = vadd.f32 0.0, %v545
        %v547 = vpop.f32.mrb[0].mxu0
        %v548 = vadd.f32 0.0, %v547
        %v549 = vpop.f32.mrb[0].mxu0
        %v550 = vadd.f32 0.0, %v549
        %v551 = vpop.f32.mrb[0].mxu0
        %v552 = vadd.f32 0.0, %v551
        %553 = vdwg.mxu0
        %v554 = vld [vmem:[%s2] sm:$0xff]
        %v555 = vld [vmem:[%s2 + $0x8] sm:$0xff]
        %v556 = vld [vmem:[%s2 + $0x10] sm:$0xff]
        %v557 = vld [vmem:[%s2 + $0x18] sm:$0xff]
        %559 = vset.pattern.permute.xlu0 0
        %560 = vperm.xlu0 %559, %v554
        %v561 = vpop.permute.xlu0 %560
        %564 = vset.pattern.permute.xlu0 0
        %565 = vperm.xlu0 %564, %v555
        %v566 = vpop.permute.xlu0 %565
        %569 = vset.pattern.permute.xlu0 0
        %570 = vperm.xlu0 %569, %v556
        %v571 = vpop.permute.xlu0 %570
        %574 = vset.pattern.permute.xlu0 0
        %575 = vperm.xlu0 %574, %v557
        %v576 = vpop.permute.xlu0 %575
        %v578 = vmul.f32 %v536, %v561
        %v579 = vmul.f32 %v538, %v561
        %v580 = vmul.f32 %v540, %v566
        %v581 = vmul.f32 %v542, %v566
        %v582 = vmul.f32 %v546, %v571
        %v583 = vmul.f32 %v548, %v571
        %v584 = vmul.f32 %v550, %v576
        %v585 = vmul.f32 %v552, %v576
        %v586 = vld [vmem:[%s3] sm:$0xff]
        %v587 = vld [vmem:[%s3 + $0x8] sm:$0xff]
        %v588 = vld [vmem:[%s3 + $0x10] sm:$0xff]
        %v589 = vld [vmem:[%s3 + $0x18] sm:$0xff]
        %591 = vset.pattern.permute.xlu0 0
        %592 = vperm.xlu0 %591, %v586
        %v593 = vpop.permute.xlu0 %592
        %596 = vset.pattern.permute.xlu0 0
        %597 = vperm.xlu0 %596, %v587
        %v598 = vpop.permute.xlu0 %597
        %601 = vset.pattern.permute.xlu0 0
        %602 = vperm.xlu0 %601, %v588
        %v603 = vpop.permute.xlu0 %602
        %606 = vset.pattern.permute.xlu0 0
        %607 = vperm.xlu0 %606, %v589
        %v608 = vpop.permute.xlu0 %607
        %v610 = vadd.f32 %v578, %v593
        %v611 = vadd.f32 %v579, %v593
        %v612 = vadd.f32 %v580, %v598
        %v613 = vadd.f32 %v581, %v598
        %v614 = vadd.f32 %v582, %v603
        %v615 = vadd.f32 %v583, %v603
        %v616 = vadd.f32 %v584, %v608
        %v617 = vadd.f32 %v585, %v608
        %v618 = vxor.u32 %v610, 2147483648
        %v619 = vxor.u32 %v611, 2147483648
        %v620 = vxor.u32 %v612, 2147483648
        %v621 = vxor.u32 %v613, 2147483648
        %v622 = vxor.u32 %v614, 2147483648
        %v623 = vxor.u32 %v615, 2147483648
        %v624 = vxor.u32 %v616, 2147483648
        %v625 = vxor.u32 %v617, 2147483648
        %v626 = vmul.f32 %v618, 1.442695
        %v627 = vpow.pop %v626
        %v628 = vmul.f32 %v619, 1.442695
        %v629 = vpow.pop %v628
        %v630 = vmul.f32 %v620, 1.442695
        %v631 = vpow.pop %v630
        %v632 = vmul.f32 %v621, 1.442695
        %v633 = vpow.pop %v632
        %v634 = vmul.f32 %v622, 1.442695
        %v635 = vpow.pop %v634
        %v636 = vmul.f32 %v623, 1.442695
        %v637 = vpow.pop %v636
        %v638 = vmul.f32 %v624, 1.442695
        %v639 = vpow.pop %v638
        %v640 = vmul.f32 %v625, 1.442695
        %v641 = vpow.pop %v640
        %v642 = vadd.f32 %v627, 1.0
        %v643 = vadd.f32 %v629, 1.0
        %v644 = vadd.f32 %v631, 1.0
        %v645 = vadd.f32 %v633, 1.0
        %v646 = vadd.f32 %v635, 1.0
        %v647 = vadd.f32 %v637, 1.0
        %v648 = vadd.f32 %v639, 1.0
        %v649 = vadd.f32 %v641, 1.0
        %v650 = vrcp.pop %v642
        %v651 = vmul.f32 1.0, %v650
        %v652 = vrcp.pop %v643
        %v653 = vmul.f32 1.0, %v652
        %v654 = vrcp.pop %v644
        %v655 = vmul.f32 1.0, %v654
        %v656 = vrcp.pop %v645
        %v657 = vmul.f32 1.0, %v656
        %v658 = vrcp.pop %v646
        %v659 = vmul.f32 1.0, %v658
        %v660 = vrcp.pop %v647
        %v661 = vmul.f32 1.0, %v660
        %v662 = vrcp.pop %v648
        %v663 = vmul.f32 1.0, %v662
        %v664 = vrcp.pop %v649
        %v665 = vmul.f32 1.0, %v664
        %v666 = vmul.f32 %v610, %v651
        %v667 = vmul.f32 %v611, %v653
        %v668 = vmul.f32 %v612, %v655
        %v669 = vmul.f32 %v613, %v657
        %v670 = vmul.f32 %v614, %v659
        %v671 = vmul.f32 %v615, %v661
        %v672 = vmul.f32 %v616, %v663
        %v673 = vmul.f32 %v617, %v665
        %vm674 = vcmask 1048448
        %675 = vst.msk [vmem:[#allocation2] sm:$0xff] %vm674, 0
        %676 = vst.msk [vmem:[#allocation2 + $0x20] sm:$0xff] %vm674, 0
        %vm677 = vcmask 130048
        %678 = vst.msk [vmem:[#allocation2 + $0x18] sm:$0xff] %vm677, 0
        %679 = vst.msk [vmem:[#allocation2 + $0x38] sm:$0xff] %vm677, 0
        %v680 = vpack.c.bf16 %v668, %v666
        %v681 = vpack.c.bf16 %v669, %v667
        %v682 = vpack.c.bf16 %v672, %v670
        %v683 = vpack.c.bf16 %v673, %v671
        %684 = vst [vmem:[#allocation2 + $0x8] sm:$0xff] %v680
        %685 = vst [vmem:[#allocation2 + $0x10] sm:$0xff] %v681
        %686 = vst [vmem:[#allocation2 + $0x28] sm:$0xff] %v682
        %687 = vst [vmem:[#allocation2 + $0x30] sm:$0xff] %v683
        %v688 = vld [vmem:[%s4] sm:$0xff]
        %v689 = vld [vmem:[%s4 + $0x8] sm:$0xff]
        %v690 = vld [vmem:[%s4 + $0x10] sm:$0xff]
        %v691 = vld [vmem:[%s4 + $0x18] sm:$0xff]
        %v692 = vlaneseq
        %v693 = vand.u32 %v692, 127
        %v694 = vadd.s32 %v693, 128
        %vm695 = vcmp.lt.s32.totalorder %v693, 0
        %v696 = vsub.s32 0, %v693
        %v697 = vsel %vm695, %v696, %v693
        %v698 = vshrl.u32 %v697, 4
        %v699 = vand.u32 %v697, 15
        %v700 = vsub.s32 0, %v699
        %v701 = vsel %vm695, %v700, %v699
        %vm702 = vcmp.lt.s32.totalorder %v694, 0
        %v703 = vsub.s32 0, %v694
        %v704 = vsel %vm702, %v703, %v694
        %v705 = vshrl.u32 %v704, 4
        %v706 = vand.u32 %v704, 15
        %v707 = vsub.s32 0, %v706
        %v708 = vsel %vm702, %v707, %v706
        %vm709 = vcmp.ne.s32.totalorder %v701, 0
        %vm710 = vcmp.ne.s32.totalorder %v708, 0
        %vm711 = vcmp.lt.s32.totalorder %v701, 0
        %vm712 = vcmp.lt.s32.totalorder %v708, 0
        %vm713 = vmand %vm711, %vm709
        %vm714 = vmand %vm712, %vm710
        %v715 = vadd.s32 %v701, 16
        %v716 = vadd.s32 %v708, 16
        %v717 = vsel %vm713, %v715, %v701
        %v718 = vsel %vm714, %v716, %v708
        %v719 = vld [vmem:[#allocation2] sm:$0xff]
        %v720 = vld [vmem:[#allocation2 + $0x8] sm:$0xff]
        %v721 = vld [vmem:[#allocation2 + $0x10] sm:$0xff]
        %v722 = vld [vmem:[#allocation2 + $0x20] sm:$0xff]
        %v723 = vld [vmem:[#allocation2 + $0x28] sm:$0xff]
        %v724 = vld [vmem:[#allocation2 + $0x30] sm:$0xff]
        %v725 = vunpack.c.l.bf16 %v719
        %v726 = vunpack.c.l.bf16 %v720
        %v727 = vunpack.c.l.bf16 %v721
        %v728 = vunpack.c.h.bf16 %v719
        %v729 = vunpack.c.h.bf16 %v720
        %v730 = vunpack.c.h.bf16 %v721
        %v731 = vunpack.c.l.bf16 %v722
        %v732 = vunpack.c.l.bf16 %v723
        %v733 = vunpack.c.l.bf16 %v724
        %v734 = vunpack.c.h.bf16 %v722
        %v735 = vunpack.c.h.bf16 %v723
        %v736 = vunpack.c.h.bf16 %v724
        %v737 = vadd.s32 %v717, 4294967295
        %v738 = vadd.s32 %v718, 4294967295
        %vm739 = vcmp.ge.s32.totalorder %v737, 0
        %vm740 = vcmp.ge.s32.totalorder %v738, 0
        %vm741 = vcmp.lt.s32.totalorder %v737, 16
        %vm742 = vcmp.lt.s32.totalorder %v738, 16
        %vm743 = vmand %vm739, %vm741
        %vm744 = vmand %vm740, %vm742
        %v745 = vsel %vm743, 1, 0
        %v746 = vsel %vm744, 1, 0
        %vm747 = vcmp.eq.s32.totalorder %v745, 1
        %vm748 = vcmp.eq.s32.totalorder %v746, 1
        %761 = vrot.lane.b32.xlu0 %v725, 17
        %v762 = vpop.permute.xlu0 %761
        %763 = vrot.lane.b32.xlu0 %v726, 17
        %v764 = vpop.permute.xlu0 %763
        %765 = vrot.lane.b32.xlu0 %v727, 17
        %v766 = vpop.permute.xlu0 %765
        %767 = vrot.lane.b32.xlu0 %v728, 17
        %v768 = vpop.permute.xlu0 %767
        %769 = vrot.lane.b32.xlu0 %v729, 17
        %v770 = vpop.permute.xlu0 %769
        %771 = vrot.lane.b32.xlu0 %v730, 17
        %v772 = vpop.permute.xlu0 %771
        %773 = vrot.lane.b32.xlu0 %v731, 17
        %v774 = vpop.permute.xlu0 %773
        %775 = vrot.lane.b32.xlu0 %v732, 17
        %v776 = vpop.permute.xlu0 %775
        %777 = vrot.lane.b32.xlu0 %v733, 17
        %v778 = vpop.permute.xlu0 %777
        %779 = vrot.lane.b32.xlu0 %v734, 17
        %v780 = vpop.permute.xlu0 %779
        %781 = vrot.lane.b32.xlu0 %v735, 17
        %v782 = vpop.permute.xlu0 %781
        %783 = vrot.lane.b32.xlu0 %v736, 17
        %v784 = vpop.permute.xlu0 %783
        %vm785 = vcmask 138240
        %v786 = vsel %vm785, %v762, %v764
        %v787 = vsel %vm785, %v764, %v766
        %v788 = vsel %vm785, %v768, %v770
        %v789 = vsel %vm785, %v770, %v772
        %v790 = vsel %vm785, %v774, %v776
        %v791 = vsel %vm785, %v776, %v778
        %v792 = vsel %vm785, %v780, %v782
        %v793 = vsel %vm785, %v782, %v784
        %v802 = vsel %vm747, %v786, 0.0
        %v803 = vsel %vm748, %v787, 0.0
        %v804 = vsel %vm747, %v788, 0.0
        %v805 = vsel %vm748, %v789, 0.0
        %v806 = vsel %vm747, %v790, 0.0
        %v807 = vsel %vm748, %v791, 0.0
        %v808 = vsel %vm747, %v792, 0.0
        %v809 = vsel %vm748, %v793, 0.0
        %811 = vset.pattern.permute.xlu0 0
        %812 = vperm.xlu0 %811, %v688
        %v813 = vpop.permute.xlu0 %812
        %816 = vset.pattern.permute.xlu0 0
        %817 = vperm.xlu0 %816, %v689
        %v818 = vpop.permute.xlu0 %817
        %821 = vset.pattern.permute.xlu0 0
        %822 = vperm.xlu0 %821, %v690
        %v823 = vpop.permute.xlu0 %822
        %826 = vset.pattern.permute.xlu0 0
        %827 = vperm.xlu0 %826, %v691
        %v828 = vpop.permute.xlu0 %827
        %v830 = vmul.f32 %v802, %v813
        %v831 = vmul.f32 %v803, %v813
        %v832 = vmul.f32 %v804, %v818
        %v833 = vmul.f32 %v805, %v818
        %v834 = vmul.f32 %v806, %v823
        %v835 = vmul.f32 %v807, %v823
        %v836 = vmul.f32 %v808, %v828
        %v837 = vmul.f32 %v809, %v828
        %v838 = vadd.f32 %v830, 0.0
        %v839 = vadd.f32 %v831, 0.0
        %v840 = vadd.f32 %v832, 0.0
        %v841 = vadd.f32 %v833, 0.0
        %v842 = vadd.f32 %v834, 0.0
        %v843 = vadd.f32 %v835, 0.0
        %v844 = vadd.f32 %v836, 0.0
        %v845 = vadd.f32 %v837, 0.0
        %846 = vset.pattern.permute.xlu0 1
        %847 = vperm.xlu0 %846, %v688
        %v848 = vpop.permute.xlu0 %847
        %850 = vset.pattern.permute.xlu0 1
        %851 = vperm.xlu0 %850, %v689
        %v852 = vpop.permute.xlu0 %851
        %854 = vset.pattern.permute.xlu0 1
        %855 = vperm.xlu0 %854, %v690
        %v856 = vpop.permute.xlu0 %855
        %858 = vset.pattern.permute.xlu0 1
        %859 = vperm.xlu0 %858, %v691
        %v860 = vpop.permute.xlu0 %859
        %v862 = vmul.f32 %v725, %v848
        %v863 = vmul.f32 %v726, %v848
        %v864 = vmul.f32 %v727, %v848
        %v865 = vmul.f32 %v728, %v852
        %v866 = vmul.f32 %v729, %v852
        %v867 = vmul.f32 %v730, %v852
        %v868 = vmul.f32 %v731, %v856
        %v869 = vmul.f32 %v732, %v856
        %v870 = vmul.f32 %v733, %v856
        %v871 = vmul.f32 %v734, %v860
        %v872 = vmul.f32 %v735, %v860
        %v873 = vmul.f32 %v736, %v860
        %886 = vrot.lane.b32.xlu0 %v862, 16
        %v887 = vpop.permute.xlu0 %886
        %888 = vrot.lane.b32.xlu0 %v863, 16
        %v889 = vpop.permute.xlu0 %888
        %890 = vrot.lane.b32.xlu0 %v864, 16
        %v891 = vpop.permute.xlu0 %890
        %892 = vrot.lane.b32.xlu0 %v865, 16
        %v893 = vpop.permute.xlu0 %892
        %894 = vrot.lane.b32.xlu0 %v866, 16
        %v895 = vpop.permute.xlu0 %894
        %896 = vrot.lane.b32.xlu0 %v867, 16
        %v897 = vpop.permute.xlu0 %896
        %898 = vrot.lane.b32.xlu0 %v868, 16
        %v899 = vpop.permute.xlu0 %898
        %900 = vrot.lane.b32.xlu0 %v869, 16
        %v901 = vpop.permute.xlu0 %900
        %902 = vrot.lane.b32.xlu0 %v870, 16
        %v903 = vpop.permute.xlu0 %902
        %904 = vrot.lane.b32.xlu0 %v871, 16
        %v905 = vpop.permute.xlu0 %904
        %906 = vrot.lane.b32.xlu0 %v872, 16
        %v907 = vpop.permute.xlu0 %906
        %908 = vrot.lane.b32.xlu0 %v873, 16
        %v909 = vpop.permute.xlu0 %908
        %v910 = vsel %vm677, %v887, %v889
        %v911 = vsel %vm677, %v889, %v891
        %v912 = vsel %vm677, %v893, %v895
        %v913 = vsel %vm677, %v895, %v897
        %v914 = vsel %vm677, %v899, %v901
        %v915 = vsel %vm677, %v901, %v903
        %v916 = vsel %vm677, %v905, %v907
        %v917 = vsel %vm677, %v907, %v909
        %v926 = vadd.f32 %v838, %v910
        %v927 = vadd.f32 %v839, %v911
        %v928 = vadd.f32 %v840, %v912
        %v929 = vadd.f32 %v841, %v913
        %v930 = vadd.f32 %v842, %v914
        %v931 = vadd.f32 %v843, %v915
        %v932 = vadd.f32 %v844, %v916
        %v933 = vadd.f32 %v845, %v917
        %v934 = vadd.s32 %v717, 1
        %v935 = vadd.s32 %v718, 1
        %vm936 = vcmp.ge.s32.totalorder %v934, 0
        %vm937 = vcmp.ge.s32.totalorder %v935, 0
        %vm938 = vcmp.lt.s32.totalorder %v934, 16
        %vm939 = vcmp.lt.s32.totalorder %v935, 16
        %vm940 = vmand %vm936, %vm938
        %vm941 = vmand %vm937, %vm939
        %v942 = vsel %vm940, 1, 0
        %v943 = vsel %vm941, 1, 0
        %vm944 = vcmp.eq.s32.totalorder %v942, 1
        %vm945 = vcmp.eq.s32.totalorder %v943, 1
        %946 = vrot.lane.b32.xlu0 %v725, 15
        %v947 = vpop.permute.xlu0 %946
        %948 = vrot.lane.b32.xlu0 %v726, 15
        %v949 = vpop.permute.xlu0 %948
        %950 = vrot.lane.b32.xlu0 %v727, 15
        %v951 = vpop.permute.xlu0 %950
        %952 = vrot.lane.b32.xlu0 %v728, 15
        %v953 = vpop.permute.xlu0 %952
        %954 = vrot.lane.b32.xlu0 %v729, 15
        %v955 = vpop.permute.xlu0 %954
        %956 = vrot.lane.b32.xlu0 %v730, 15
        %v957 = vpop.permute.xlu0 %956
        %958 = vrot.lane.b32.xlu0 %v731, 15
        %v959 = vpop.permute.xlu0 %958
        %960 = vrot.lane.b32.xlu0 %v732, 15
        %v961 = vpop.permute.xlu0 %960
        %962 = vrot.lane.b32.xlu0 %v733, 15
        %v963 = vpop.permute.xlu0 %962
        %964 = vrot.lane.b32.xlu0 %v734, 15
        %v965 = vpop.permute.xlu0 %964
        %966 = vrot.lane.b32.xlu0 %v735, 15
        %v967 = vpop.permute.xlu0 %966
        %968 = vrot.lane.b32.xlu0 %v736, 15
        %v969 = vpop.permute.xlu0 %968
        %vm970 = vcmask 121856
        %v971 = vsel %vm970, %v947, %v949
        %v972 = vsel %vm970, %v949, %v951
        %v973 = vsel %vm970, %v953, %v955
        %v974 = vsel %vm970, %v955, %v957
        %v975 = vsel %vm970, %v959, %v961
        %v976 = vsel %vm970, %v961, %v963
        %v977 = vsel %vm970, %v965, %v967
        %v978 = vsel %vm970, %v967, %v969
        %v987 = vsel %vm944, %v971, 0.0
        %v988 = vsel %vm945, %v972, 0.0
        %v989 = vsel %vm944, %v973, 0.0
        %v990 = vsel %vm945, %v974, 0.0
        %v991 = vsel %vm944, %v975, 0.0
        %v992 = vsel %vm945, %v976, 0.0
        %v993 = vsel %vm944, %v977, 0.0
        %v994 = vsel %vm945, %v978, 0.0
        %995 = vset.pattern.permute.xlu0 2
        %996 = vperm.xlu0 %995, %v688
        %v997 = vpop.permute.xlu0 %996
        %999 = vset.pattern.permute.xlu0 2
        %1000 = vperm.xlu0 %999, %v689
        %v1001 = vpop.permute.xlu0 %1000
        %1003 = vset.pattern.permute.xlu0 2
        %1004 = vperm.xlu0 %1003, %v690
        %v1005 = vpop.permute.xlu0 %1004
        %1007 = vset.pattern.permute.xlu0 2
        %1008 = vperm.xlu0 %1007, %v691
        %v1009 = vpop.permute.xlu0 %1008
        %v1011 = vmul.f32 %v987, %v997
        %v1012 = vmul.f32 %v988, %v997
        %v1013 = vmul.f32 %v989, %v1001
        %v1014 = vmul.f32 %v990, %v1001
        %v1015 = vmul.f32 %v991, %v1005
        %v1016 = vmul.f32 %v992, %v1005
        %v1017 = vmul.f32 %v993, %v1009
        %v1018 = vmul.f32 %v994, %v1009
        %v1019 = vadd.f32 %v926, %v1011
        %v1020 = vadd.f32 %v927, %v1012
        %v1021 = vadd.f32 %v928, %v1013
        %v1022 = vadd.f32 %v929, %v1014
        %v1023 = vadd.f32 %v930, %v1015
        %v1024 = vadd.f32 %v931, %v1016
        %v1025 = vadd.f32 %v932, %v1017
        %v1026 = vadd.f32 %v933, %v1018
        %1027 = vrot.lane.b32.xlu0 %v725, 1
        %v1028 = vpop.permute.xlu0 %1027
        %1029 = vrot.lane.b32.xlu0 %v726, 1
        %v1030 = vpop.permute.xlu0 %1029
        %1031 = vrot.lane.b32.xlu0 %v727, 1
        %v1032 = vpop.permute.xlu0 %1031
        %1033 = vrot.lane.b32.xlu0 %v728, 1
        %v1034 = vpop.permute.xlu0 %1033
        %1035 = vrot.lane.b32.xlu0 %v729, 1
        %v1036 = vpop.permute.xlu0 %1035
        %1037 = vrot.lane.b32.xlu0 %v730, 1
        %v1038 = vpop.permute.xlu0 %1037
        %1039 = vrot.lane.b32.xlu0 %v731, 1
        %v1040 = vpop.permute.xlu0 %1039
        %1041 = vrot.lane.b32.xlu0 %v732, 1
        %v1042 = vpop.permute.xlu0 %1041
        %1043 = vrot.lane.b32.xlu0 %v733, 1
        %v1044 = vpop.permute.xlu0 %1043
        %1045 = vrot.lane.b32.xlu0 %v734, 1
        %v1046 = vpop.permute.xlu0 %1045
        %1047 = vrot.lane.b32.xlu0 %v735, 1
        %v1048 = vpop.permute.xlu0 %1047
        %1049 = vrot.lane.b32.xlu0 %v736, 1
        %v1050 = vpop.permute.xlu0 %1049
        %vm1051 = vcmask 7168
        %v1052 = vsel %vm1051, %v1028, %v1030
        %v1053 = vsel %vm1051, %v1030, %v1032
        %v1054 = vsel %vm1051, %v1034, %v1036
        %v1055 = vsel %vm1051, %v1036, %v1038
        %v1056 = vsel %vm1051, %v1040, %v1042
        %v1057 = vsel %vm1051, %v1042, %v1044
        %v1058 = vsel %vm1051, %v1046, %v1048
        %v1059 = vsel %vm1051, %v1048, %v1050
        %v1068 = vsel %vm747, %v1052, 0.0
        %v1069 = vsel %vm748, %v1053, 0.0
        %v1070 = vsel %vm747, %v1054, 0.0
        %v1071 = vsel %vm748, %v1055, 0.0
        %v1072 = vsel %vm747, %v1056, 0.0
        %v1073 = vsel %vm748, %v1057, 0.0
        %v1074 = vsel %vm747, %v1058, 0.0
        %v1075 = vsel %vm748, %v1059, 0.0
        %1076 = vset.pattern.permute.xlu0 3
        %1077 = vperm.xlu0 %1076, %v688
        %v1078 = vpop.permute.xlu0 %1077
        %1080 = vset.pattern.permute.xlu0 3
        %1081 = vperm.xlu0 %1080, %v689
        %v1082 = vpop.permute.xlu0 %1081
        %1084 = vset.pattern.permute.xlu0 3
        %1085 = vperm.xlu0 %1084, %v690
        %v1086 = vpop.permute.xlu0 %1085
        %1088 = vset.pattern.permute.xlu0 3
        %1089 = vperm.xlu0 %1088, %v691
        %v1090 = vpop.permute.xlu0 %1089
        %v1092 = vmul.f32 %v1068, %v1078
        %v1093 = vmul.f32 %v1069, %v1078
        %v1094 = vmul.f32 %v1070, %v1082
        %v1095 = vmul.f32 %v1071, %v1082
        %v1096 = vmul.f32 %v1072, %v1086
        %v1097 = vmul.f32 %v1073, %v1086
        %v1098 = vmul.f32 %v1074, %v1090
        %v1099 = vmul.f32 %v1075, %v1090
        %v1100 = vadd.f32 %v1019, %v1092
        %v1101 = vadd.f32 %v1020, %v1093
        %v1102 = vadd.f32 %v1021, %v1094
        %v1103 = vadd.f32 %v1022, %v1095
        %v1104 = vadd.f32 %v1023, %v1096
        %v1105 = vadd.f32 %v1024, %v1097
        %v1106 = vadd.f32 %v1025, %v1098
        %v1107 = vadd.f32 %v1026, %v1099
        %1108 = vset.pattern.permute.xlu0 4
        %1109 = vperm.xlu0 %1108, %v688
        %v1110 = vpop.permute.xlu0 %1109
        %1112 = vset.pattern.permute.xlu0 4
        %1113 = vperm.xlu0 %1112, %v689
        %v1114 = vpop.permute.xlu0 %1113
        %1116 = vset.pattern.permute.xlu0 4
        %1117 = vperm.xlu0 %1116, %v690
        %v1118 = vpop.permute.xlu0 %1117
        %1120 = vset.pattern.permute.xlu0 4
        %1121 = vperm.xlu0 %1120, %v691
        %v1122 = vpop.permute.xlu0 %1121
        %v1124 = vmul.f32 %v726, %v1110
        %v1125 = vmul.f32 %v727, %v1110
        %v1126 = vmul.f32 %v729, %v1114
        %v1127 = vmul.f32 %v730, %v1114
        %v1128 = vmul.f32 %v732, %v1118
        %v1129 = vmul.f32 %v733, %v1118
        %v1130 = vmul.f32 %v735, %v1122
        %v1131 = vmul.f32 %v736, %v1122
        %v1132 = vadd.f32 %v1100, %v1124
        %v1133 = vadd.f32 %v1101, %v1125
        %v1134 = vadd.f32 %v1102, %v1126
        %v1135 = vadd.f32 %v1103, %v1127
        %v1136 = vadd.f32 %v1104, %v1128
        %v1137 = vadd.f32 %v1105, %v1129
        %v1138 = vadd.f32 %v1106, %v1130
        %v1139 = vadd.f32 %v1107, %v1131
        %v1140 = vld [vmem:[#allocation2 + $0x8] sm:$0xff]
        %v1141 = vld [vmem:[#allocation2 + $0x10] sm:$0xff]
        %v1142 = vld [vmem:[#allocation2 + $0x18] sm:$0xff]
        %v1143 = vld [vmem:[#allocation2 + $0x28] sm:$0xff]
        %v1144 = vld [vmem:[#allocation2 + $0x30] sm:$0xff]
        %v1145 = vld [vmem:[#allocation2 + $0x38] sm:$0xff]
        %v1146 = vunpack.c.l.bf16 %v1140
        %v1147 = vunpack.c.l.bf16 %v1141
        %v1148 = vunpack.c.l.bf16 %v1142
        %v1149 = vunpack.c.h.bf16 %v1140
        %v1150 = vunpack.c.h.bf16 %v1141
        %v1151 = vunpack.c.h.bf16 %v1142
        %v1152 = vunpack.c.l.bf16 %v1143
        %v1153 = vunpack.c.l.bf16 %v1144
        %v1154 = vunpack.c.l.bf16 %v1145
        %v1155 = vunpack.c.h.bf16 %v1143
        %v1156 = vunpack.c.h.bf16 %v1144
        %v1157 = vunpack.c.h.bf16 %v1145
        %1170 = vrot.lane.b32.xlu0 %v1146, 127
        %v1171 = vpop.permute.xlu0 %1170
        %1172 = vrot.lane.b32.xlu0 %v1147, 127
        %v1173 = vpop.permute.xlu0 %1172
        %1174 = vrot.lane.b32.xlu0 %v1148, 127
        %v1175 = vpop.permute.xlu0 %1174
        %1176 = vrot.lane.b32.xlu0 %v1149, 127
        %v1177 = vpop.permute.xlu0 %1176
        %1178 = vrot.lane.b32.xlu0 %v1150, 127
        %v1179 = vpop.permute.xlu0 %1178
        %1180 = vrot.lane.b32.xlu0 %v1151, 127
        %v1181 = vpop.permute.xlu0 %1180
        %1182 = vrot.lane.b32.xlu0 %v1152, 127
        %v1183 = vpop.permute.xlu0 %1182
        %1184 = vrot.lane.b32.xlu0 %v1153, 127
        %v1185 = vpop.permute.xlu0 %1184
        %1186 = vrot.lane.b32.xlu0 %v1154, 127
        %v1187 = vpop.permute.xlu0 %1186
        %1188 = vrot.lane.b32.xlu0 %v1155, 127
        %v1189 = vpop.permute.xlu0 %1188
        %1190 = vrot.lane.b32.xlu0 %v1156, 127
        %v1191 = vpop.permute.xlu0 %1190
        %1192 = vrot.lane.b32.xlu0 %v1157, 127
        %v1193 = vpop.permute.xlu0 %1192
        %vm1194 = vcmask 1039360
        %v1195 = vsel %vm1194, %v1171, %v1173
        %v1196 = vsel %vm1194, %v1173, %v1175
        %v1197 = vsel %vm1194, %v1177, %v1179
        %v1198 = vsel %vm1194, %v1179, %v1181
        %v1199 = vsel %vm1194, %v1183, %v1185
        %v1200 = vsel %vm1194, %v1185, %v1187
        %v1201 = vsel %vm1194, %v1189, %v1191
        %v1202 = vsel %vm1194, %v1191, %v1193
        %v1211 = vsel %vm944, %v1195, 0.0
        %v1212 = vsel %vm945, %v1196, 0.0
        %v1213 = vsel %vm944, %v1197, 0.0
        %v1214 = vsel %vm945, %v1198, 0.0
        %v1215 = vsel %vm944, %v1199, 0.0
        %v1216 = vsel %vm945, %v1200, 0.0
        %v1217 = vsel %vm944, %v1201, 0.0
        %v1218 = vsel %vm945, %v1202, 0.0
        %1219 = vset.pattern.permute.xlu0 5
        %1220 = vperm.xlu0 %1219, %v688
        %v1221 = vpop.permute.xlu0 %1220
        %1223 = vset.pattern.permute.xlu0 5
        %1224 = vperm.xlu0 %1223, %v689
        %v1225 = vpop.permute.xlu0 %1224
        %1227 = vset.pattern.permute.xlu0 5
        %1228 = vperm.xlu0 %1227, %v690
        %v1229 = vpop.permute.xlu0 %1228
        %1231 = vset.pattern.permute.xlu0 5
        %1232 = vperm.xlu0 %1231, %v691
        %v1233 = vpop.permute.xlu0 %1232
        %v1235 = vmul.f32 %v1211, %v1221
        %v1236 = vmul.f32 %v1212, %v1221
        %v1237 = vmul.f32 %v1213, %v1225
        %v1238 = vmul.f32 %v1214, %v1225
        %v1239 = vmul.f32 %v1215, %v1229
        %v1240 = vmul.f32 %v1216, %v1229
        %v1241 = vmul.f32 %v1217, %v1233
        %v1242 = vmul.f32 %v1218, %v1233
        %v1243 = vadd.f32 %v1132, %v1235
        %v1244 = vadd.f32 %v1133, %v1236
        %v1245 = vadd.f32 %v1134, %v1237
        %v1246 = vadd.f32 %v1135, %v1238
        %v1247 = vadd.f32 %v1136, %v1239
        %v1248 = vadd.f32 %v1137, %v1240
        %v1249 = vadd.f32 %v1138, %v1241
        %v1250 = vadd.f32 %v1139, %v1242
        %1251 = vrot.lane.b32.xlu0 %v1146, 113
        %v1252 = vpop.permute.xlu0 %1251
        %1253 = vrot.lane.b32.xlu0 %v1147, 113
        %v1254 = vpop.permute.xlu0 %1253
        %1255 = vrot.lane.b32.xlu0 %v1148, 113
        %v1256 = vpop.permute.xlu0 %1255
        %1257 = vrot.lane.b32.xlu0 %v1149, 113
        %v1258 = vpop.permute.xlu0 %1257
        %1259 = vrot.lane.b32.xlu0 %v1150, 113
        %v1260 = vpop.permute.xlu0 %1259
        %1261 = vrot.lane.b32.xlu0 %v1151, 113
        %v1262 = vpop.permute.xlu0 %1261
        %1263 = vrot.lane.b32.xlu0 %v1152, 113
        %v1264 = vpop.permute.xlu0 %1263
        %1265 = vrot.lane.b32.xlu0 %v1153, 113
        %v1266 = vpop.permute.xlu0 %1265
        %1267 = vrot.lane.b32.xlu0 %v1154, 113
        %v1268 = vpop.permute.xlu0 %1267
        %1269 = vrot.lane.b32.xlu0 %v1155, 113
        %v1270 = vpop.permute.xlu0 %1269
        %1271 = vrot.lane.b32.xlu0 %v1156, 113
        %v1272 = vpop.permute.xlu0 %1271
        %1273 = vrot.lane.b32.xlu0 %v1157, 113
        %v1274 = vpop.permute.xlu0 %1273
        %vm1275 = vcmask 924672
        %v1276 = vsel %vm1275, %v1252, %v1254
        %v1277 = vsel %vm1275, %v1254, %v1256
        %v1278 = vsel %vm1275, %v1258, %v1260
        %v1279 = vsel %vm1275, %v1260, %v1262
        %v1280 = vsel %vm1275, %v1264, %v1266
        %v1281 = vsel %vm1275, %v1266, %v1268
        %v1282 = vsel %vm1275, %v1270, %v1272
        %v1283 = vsel %vm1275, %v1272, %v1274
        %v1292 = vsel %vm747, %v1276, 0.0
        %v1293 = vsel %vm748, %v1277, 0.0
        %v1294 = vsel %vm747, %v1278, 0.0
        %v1295 = vsel %vm748, %v1279, 0.0
        %v1296 = vsel %vm747, %v1280, 0.0
        %v1297 = vsel %vm748, %v1281, 0.0
        %v1298 = vsel %vm747, %v1282, 0.0
        %v1299 = vsel %vm748, %v1283, 0.0
        %1300 = vset.pattern.permute.xlu0 6
        %1301 = vperm.xlu0 %1300, %v688
        %v1302 = vpop.permute.xlu0 %1301
        %1304 = vset.pattern.permute.xlu0 6
        %1305 = vperm.xlu0 %1304, %v689
        %v1306 = vpop.permute.xlu0 %1305
        %1308 = vset.pattern.permute.xlu0 6
        %1309 = vperm.xlu0 %1308, %v690
        %v1310 = vpop.permute.xlu0 %1309
        %1312 = vset.pattern.permute.xlu0 6
        %1313 = vperm.xlu0 %1312, %v691
        %v1314 = vpop.permute.xlu0 %1313
        %v1316 = vmul.f32 %v1292, %v1302
        %v1317 = vmul.f32 %v1293, %v1302
        %v1318 = vmul.f32 %v1294, %v1306
        %v1319 = vmul.f32 %v1295, %v1306
        %v1320 = vmul.f32 %v1296, %v1310
        %v1321 = vmul.f32 %v1297, %v1310
        %v1322 = vmul.f32 %v1298, %v1314
        %v1323 = vmul.f32 %v1299, %v1314
        %v1324 = vadd.f32 %v1243, %v1316
        %v1325 = vadd.f32 %v1244, %v1317
        %v1326 = vadd.f32 %v1245, %v1318
        %v1327 = vadd.f32 %v1246, %v1319
        %v1328 = vadd.f32 %v1247, %v1320
        %v1329 = vadd.f32 %v1248, %v1321
        %v1330 = vadd.f32 %v1249, %v1322
        %v1331 = vadd.f32 %v1250, %v1323
        %1332 = vset.pattern.permute.xlu0 7
        %1333 = vperm.xlu0 %1332, %v688
        %v1334 = vpop.permute.xlu0 %1333
        %1336 = vset.pattern.permute.xlu0 7
        %1337 = vperm.xlu0 %1336, %v689
        %v1338 = vpop.permute.xlu0 %1337
        %1340 = vset.pattern.permute.xlu0 7
        %1341 = vperm.xlu0 %1340, %v690
        %v1342 = vpop.permute.xlu0 %1341
        %1344 = vset.pattern.permute.xlu0 7
        %1345 = vperm.xlu0 %1344, %v691
        %v1346 = vpop.permute.xlu0 %1345
        %v1348 = vmul.f32 %v1146, %v1334
        %v1349 = vmul.f32 %v1147, %v1334
        %v1350 = vmul.f32 %v1148, %v1334
        %v1351 = vmul.f32 %v1149, %v1338
        %v1352 = vmul.f32 %v1150, %v1338
        %v1353 = vmul.f32 %v1151, %v1338
        %v1354 = vmul.f32 %v1152, %v1342
        %v1355 = vmul.f32 %v1153, %v1342
        %v1356 = vmul.f32 %v1154, %v1342
        %v1357 = vmul.f32 %v1155, %v1346
        %v1358 = vmul.f32 %v1156, %v1346
        %v1359 = vmul.f32 %v1157, %v1346
        %1372 = vrot.lane.b32.xlu0 %v1348, 112
        %v1373 = vpop.permute.xlu0 %1372
        %1374 = vrot.lane.b32.xlu0 %v1349, 112
        %v1375 = vpop.permute.xlu0 %1374
        %1376 = vrot.lane.b32.xlu0 %v1350, 112
        %v1377 = vpop.permute.xlu0 %1376
        %1378 = vrot.lane.b32.xlu0 %v1351, 112
        %v1379 = vpop.permute.xlu0 %1378
        %1380 = vrot.lane.b32.xlu0 %v1352, 112
        %v1381 = vpop.permute.xlu0 %1380
        %1382 = vrot.lane.b32.xlu0 %v1353, 112
        %v1383 = vpop.permute.xlu0 %1382
        %1384 = vrot.lane.b32.xlu0 %v1354, 112
        %v1385 = vpop.permute.xlu0 %1384
        %1386 = vrot.lane.b32.xlu0 %v1355, 112
        %v1387 = vpop.permute.xlu0 %1386
        %1388 = vrot.lane.b32.xlu0 %v1356, 112
        %v1389 = vpop.permute.xlu0 %1388
        %1390 = vrot.lane.b32.xlu0 %v1357, 112
        %v1391 = vpop.permute.xlu0 %1390
        %1392 = vrot.lane.b32.xlu0 %v1358, 112
        %v1393 = vpop.permute.xlu0 %1392
        %1394 = vrot.lane.b32.xlu0 %v1359, 112
        %v1395 = vpop.permute.xlu0 %1394
        %vm1396 = vcmask 916480
        %v1397 = vsel %vm1396, %v1373, %v1375
        %v1398 = vsel %vm1396, %v1375, %v1377
        %v1399 = vsel %vm1396, %v1379, %v1381
        %v1400 = vsel %vm1396, %v1381, %v1383
        %v1401 = vsel %vm1396, %v1385, %v1387
        %v1402 = vsel %vm1396, %v1387, %v1389
        %v1403 = vsel %vm1396, %v1391, %v1393
        %v1404 = vsel %vm1396, %v1393, %v1395
        %v1413 = vadd.f32 %v1324, %v1397
        %v1414 = vadd.f32 %v1325, %v1398
        %v1415 = vadd.f32 %v1326, %v1399
        %v1416 = vadd.f32 %v1327, %v1400
        %v1417 = vadd.f32 %v1328, %v1401
        %v1418 = vadd.f32 %v1329, %v1402
        %v1419 = vadd.f32 %v1330, %v1403
        %v1420 = vadd.f32 %v1331, %v1404
        %1421 = vrot.lane.b32.xlu0 %v1146, 111
        %v1422 = vpop.permute.xlu0 %1421
        %1423 = vrot.lane.b32.xlu0 %v1147, 111
        %v1424 = vpop.permute.xlu0 %1423
        %1425 = vrot.lane.b32.xlu0 %v1148, 111
        %v1426 = vpop.permute.xlu0 %1425
        %1427 = vrot.lane.b32.xlu0 %v1149, 111
        %v1428 = vpop.permute.xlu0 %1427
        %1429 = vrot.lane.b32.xlu0 %v1150, 111
        %v1430 = vpop.permute.xlu0 %1429
        %1431 = vrot.lane.b32.xlu0 %v1151, 111
        %v1432 = vpop.permute.xlu0 %1431
        %1433 = vrot.lane.b32.xlu0 %v1152, 111
        %v1434 = vpop.permute.xlu0 %1433
        %1435 = vrot.lane.b32.xlu0 %v1153, 111
        %v1436 = vpop.permute.xlu0 %1435
        %1437 = vrot.lane.b32.xlu0 %v1154, 111
        %v1438 = vpop.permute.xlu0 %1437
        %1439 = vrot.lane.b32.xlu0 %v1155, 111
        %v1440 = vpop.permute.xlu0 %1439
        %1441 = vrot.lane.b32.xlu0 %v1156, 111
        %v1442 = vpop.permute.xlu0 %1441
        %1443 = vrot.lane.b32.xlu0 %v1157, 111
        %v1444 = vpop.permute.xlu0 %1443
        %vm1445 = vcmask 908288
        %v1446 = vsel %vm1445, %v1422, %v1424
        %v1447 = vsel %vm1445, %v1424, %v1426
        %v1448 = vsel %vm1445, %v1428, %v1430
        %v1449 = vsel %vm1445, %v1430, %v1432
        %v1450 = vsel %vm1445, %v1434, %v1436
        %v1451 = vsel %vm1445, %v1436, %v1438
        %v1452 = vsel %vm1445, %v1440, %v1442
        %v1453 = vsel %vm1445, %v1442, %v1444
        %v1462 = vsel %vm944, %v1446, 0.0
        %v1463 = vsel %vm945, %v1447, 0.0
        %v1464 = vsel %vm944, %v1448, 0.0
        %v1465 = vsel %vm945, %v1449, 0.0
        %v1466 = vsel %vm944, %v1450, 0.0
        %v1467 = vsel %vm945, %v1451, 0.0
        %v1468 = vsel %vm944, %v1452, 0.0
        %v1469 = vsel %vm945, %v1453, 0.0
        %1470 = vset.pattern.permute.xlu0 8
        %1471 = vperm.xlu0 %1470, %v688
        %v1472 = vpop.permute.xlu0 %1471
        %1474 = vset.pattern.permute.xlu0 8
        %1475 = vperm.xlu0 %1474, %v689
        %v1476 = vpop.permute.xlu0 %1475
        %1478 = vset.pattern.permute.xlu0 8
        %1479 = vperm.xlu0 %1478, %v690
        %v1480 = vpop.permute.xlu0 %1479
        %1482 = vset.pattern.permute.xlu0 8
        %1483 = vperm.xlu0 %1482, %v691
        %v1484 = vpop.permute.xlu0 %1483
        %v1486 = vmul.f32 %v1462, %v1472
        %v1487 = vmul.f32 %v1463, %v1472
        %v1488 = vmul.f32 %v1464, %v1476
        %v1489 = vmul.f32 %v1465, %v1476
        %v1490 = vmul.f32 %v1466, %v1480
        %v1491 = vmul.f32 %v1467, %v1480
        %v1492 = vmul.f32 %v1468, %v1484
        %v1493 = vmul.f32 %v1469, %v1484
        %v1494 = vadd.f32 %v1413, %v1486
        %v1495 = vadd.f32 %v1414, %v1487
        %v1496 = vadd.f32 %v1415, %v1488
        %v1497 = vadd.f32 %v1416, %v1489
        %v1498 = vadd.f32 %v1417, %v1490
        %v1499 = vadd.f32 %v1418, %v1491
        %v1500 = vadd.f32 %v1419, %v1492
        %v1501 = vadd.f32 %v1420, %v1493
        %v1502 = vld [vmem:[%s5] sm:$0xff]
        %v1503 = vld [vmem:[%s5 + $0x8] sm:$0xff]
        %v1504 = vld [vmem:[%s5 + $0x10] sm:$0xff]
        %v1505 = vld [vmem:[%s5 + $0x18] sm:$0xff]
        %1507 = vset.pattern.permute.xlu0 0
        %1508 = vperm.xlu0 %1507, %v1502
        %v1509 = vpop.permute.xlu0 %1508
        %1512 = vset.pattern.permute.xlu0 0
        %1513 = vperm.xlu0 %1512, %v1503
        %v1514 = vpop.permute.xlu0 %1513
        %1517 = vset.pattern.permute.xlu0 0
        %1518 = vperm.xlu0 %1517, %v1504
        %v1519 = vpop.permute.xlu0 %1518
        %1522 = vset.pattern.permute.xlu0 0
        %1523 = vperm.xlu0 %1522, %v1505
        %v1524 = vpop.permute.xlu0 %1523
        %v1526 = vmul.f32 %v1494, %v1509
        %v1527 = vmul.f32 %v1495, %v1509
        %v1528 = vmul.f32 %v1496, %v1514
        %v1529 = vmul.f32 %v1497, %v1514
        %v1530 = vmul.f32 %v1498, %v1519
        %v1531 = vmul.f32 %v1499, %v1519
        %v1532 = vmul.f32 %v1500, %v1524
        %v1533 = vmul.f32 %v1501, %v1524
        %v1534 = vld [vmem:[%s6] sm:$0xff]
        %v1535 = vld [vmem:[%s6 + $0x8] sm:$0xff]
        %v1536 = vld [vmem:[%s6 + $0x10] sm:$0xff]
        %v1537 = vld [vmem:[%s6 + $0x18] sm:$0xff]
        %1539 = vset.pattern.permute.xlu0 0
        %1540 = vperm.xlu0 %1539, %v1534
        %v1541 = vpop.permute.xlu0 %1540
        %1544 = vset.pattern.permute.xlu0 0
        %1545 = vperm.xlu0 %1544, %v1535
        %v1546 = vpop.permute.xlu0 %1545
        %1549 = vset.pattern.permute.xlu0 0
        %1550 = vperm.xlu0 %1549, %v1536
        %v1551 = vpop.permute.xlu0 %1550
        %1554 = vset.pattern.permute.xlu0 0
        %1555 = vperm.xlu0 %1554, %v1537
        %v1556 = vpop.permute.xlu0 %1555
        %v1558 = vadd.f32 %v1526, %v1541
        %v1559 = vadd.f32 %v1527, %v1541
        %v1560 = vadd.f32 %v1528, %v1546
        %v1561 = vadd.f32 %v1529, %v1546
        %v1562 = vadd.f32 %v1530, %v1551
        %v1563 = vadd.f32 %v1531, %v1551
        %v1564 = vadd.f32 %v1532, %v1556
        %v1565 = vadd.f32 %v1533, %v1556
        %v1566 = vxor.u32 %v1558, 2147483648
        %v1567 = vxor.u32 %v1559, 2147483648
        %v1568 = vxor.u32 %v1560, 2147483648
        %v1569 = vxor.u32 %v1561, 2147483648
        %v1570 = vxor.u32 %v1562, 2147483648
        %v1571 = vxor.u32 %v1563, 2147483648
        %v1572 = vxor.u32 %v1564, 2147483648
        %v1573 = vxor.u32 %v1565, 2147483648
        %v1574 = vmul.f32 %v1566, 1.442695
        %v1575 = vpow.pop %v1574
        %v1576 = vmul.f32 %v1567, 1.442695
        %v1577 = vpow.pop %v1576
        %v1578 = vmul.f32 %v1568, 1.442695
        %v1579 = vpow.pop %v1578
        %v1580 = vmul.f32 %v1569, 1.442695
        %v1581 = vpow.pop %v1580
        %v1582 = vmul.f32 %v1570, 1.442695
        %v1583 = vpow.pop %v1582
        %v1584 = vmul.f32 %v1571, 1.442695
        %v1585 = vpow.pop %v1584
        %v1586 = vmul.f32 %v1572, 1.442695
        %v1587 = vpow.pop %v1586
        %v1588 = vmul.f32 %v1573, 1.442695
        %v1589 = vpow.pop %v1588
        %v1590 = vadd.f32 %v1575, 1.0
        %v1591 = vadd.f32 %v1577, 1.0
        %v1592 = vadd.f32 %v1579, 1.0
        %v1593 = vadd.f32 %v1581, 1.0
        %v1594 = vadd.f32 %v1583, 1.0
        %v1595 = vadd.f32 %v1585, 1.0
        %v1596 = vadd.f32 %v1587, 1.0
        %v1597 = vadd.f32 %v1589, 1.0
        %v1598 = vrcp.pop %v1590
        %v1599 = vmul.f32 1.0, %v1598
        %v1600 = vrcp.pop %v1591
        %v1601 = vmul.f32 1.0, %v1600
        %v1602 = vrcp.pop %v1592
        %v1603 = vmul.f32 1.0, %v1602
        %v1604 = vrcp.pop %v1593
        %v1605 = vmul.f32 1.0, %v1604
        %v1606 = vrcp.pop %v1594
        %v1607 = vmul.f32 1.0, %v1606
        %v1608 = vrcp.pop %v1595
        %v1609 = vmul.f32 1.0, %v1608
        %v1610 = vrcp.pop %v1596
        %v1611 = vmul.f32 1.0, %v1610
        %v1612 = vrcp.pop %v1597
        %v1613 = vmul.f32 1.0, %v1612
        %v1614 = vmul.f32 %v1558, %v1599
        %v1615 = vmul.f32 %v1559, %v1601
        %v1616 = vmul.f32 %v1560, %v1603
        %v1617 = vmul.f32 %v1561, %v1605
        %v1618 = vmul.f32 %v1562, %v1607
        %v1619 = vmul.f32 %v1563, %v1609
        %v1620 = vmul.f32 %v1564, %v1611
        %v1621 = vmul.f32 %v1565, %v1613
        %v1622 = vadd.f32 %v1614, %v1615
        %1623 = vadd.xlane.f32.xlu0 %v1622
        %v1624 = vpop.xlane.xlu0 %1623
        %v1625 = vadd.f32 %v1616, %v1617
        %1626 = vadd.xlane.f32.xlu0 %v1625
        %v1627 = vpop.xlane.xlu0 %1626
        %v1628 = vadd.f32 %v1618, %v1619
        %1629 = vadd.xlane.f32.xlu0 %v1628
        %v1630 = vpop.xlane.xlu0 %1629
        %v1631 = vadd.f32 %v1620, %v1621
        %1632 = vadd.xlane.f32.xlu0 %v1631
        %v1633 = vpop.xlane.xlu0 %1632
        %v1634 = vrcp.pop 256.0
        %v1635 = vmul.f32 %v1624, %v1634
        %v1636 = vmul.f32 %v1627, %v1634
        %v1637 = vmul.f32 %v1630, %v1634
        %v1638 = vmul.f32 %v1633, %v1634
        %v1639 = vld [vmem:[%s7] sm:$0x3]
        %v1640 = vld [vmem:[%s8] sm:$0x3]
        %vm1641 = vcmask 261120
        %v1643 = vsel %vm1641, %v1639, 0
        %1645 = vmatprep.subr.mxu0 0.0
        %1646 = vmatpush1.msra.mxu0 %v1635
        %1647 = vmatprep.subr.mxu0 0.0
        %1648 = vmatpush1.msra.mxu0 %v1636
        %1649 = vmatprep.subr.mxu0 0.0
        %1650 = vmatpush1.msra.mxu0 %v1637
        %1651 = vmatprep.subr.mxu0 0.0
        %1652 = vmatpush1.msra.mxu0 %v1638
        %1653 = vmatprep.subr.mxu0 0.0
        %1654 = vmatpush1.msra.mxu0 0.0
        %1655 = vmatprep.subr.mxu0 0.0
        %1656 = vmatpush1.msra.mxu0 0.0
        %1657 = vmatprep.subr.mxu0 0.0
        %1658 = vmatpush1.msra.mxu0 0.0
        %1659 = vmatprep.subr.mxu0 0.0
        %1660 = vmatpush1.msra.mxu0 0.0
        %1661 = vmatprep.subr.mxu0 0.0
        %1662 = vmatpush1.msra.mxu0 0.0
        %1663 = vmatprep.subr.mxu0 0.0
        %1664 = vmatpush1.msra.mxu0 0.0
        %1665 = vmatprep.subr.mxu0 0.0
        %1666 = vmatpush1.msra.mxu0 0.0
        %1667 = vmatprep.subr.mxu0 0.0
        %1668 = vmatpush1.msra.mxu0 0.0
        %1669 = vmatprep.subr.mxu0 0.0
        %1670 = vmatpush1.msra.mxu0 0.0
        %1671 = vmatprep.subr.mxu0 0.0
        %1672 = vmatpush1.msra.mxu0 0.0
        %1673 = vmatprep.subr.mxu0 0.0
        %1674 = vmatpush1.msra.mxu0 0.0
        %1675 = vmatprep.subr.mxu0 0.0
        %1676 = vmatpush1.msra.mxu0 0.0
        %1677 = vmatprep.subr.mxu0 0.0
        %1678 = vmatpush1.msra.mxu0 0.0
        %1679 = vmatprep.subr.mxu0 0.0
        %1680 = vmatpush1.msra.mxu0 0.0
        %1681 = vmatprep.subr.mxu0 0.0
        %1682 = vmatpush1.msra.mxu0 0.0
        %1683 = vmatprep.subr.mxu0 0.0
        %1684 = vmatpush1.msra.mxu0 0.0
        %1685 = vmatprep.subr.mxu0 0.0
        %1686 = vmatpush1.msra.mxu0 0.0
        %1687 = vmatprep.subr.mxu0 0.0
        %1688 = vmatpush1.msra.mxu0 0.0
        %1689 = vmatprep.subr.mxu0 0.0
        %1690 = vmatpush1.msra.mxu0 0.0
        %1691 = vmatprep.subr.mxu0 0.0
        %1692 = vmatpush1.msra.mxu0 0.0
        %1693 = vmatprep.subr.mxu0 0.0
        %1694 = vmatpush1.msra.mxu0 0.0
        %1695 = vmatprep.subr.mxu0 0.0
        %1696 = vmatpush1.msra.mxu0 0.0
        %1697 = vmatprep.subr.mxu0 0.0
        %1698 = vmatpush1.msra.mxu0 0.0
        %1699 = vmatprep.subr.mxu0 0.0
        %1700 = vmatpush1.msra.mxu0 0.0
        %1701 = vmatprep.subr.mxu0 0.0
        %1702 = vmatpush1.msra.mxu0 0.0
        %1703 = vmatprep.subr.mxu0 0.0
        %1704 = vmatpush1.msra.mxu0 0.0
        %1705 = vmatprep.subr.mxu0 0.0
        %1706 = vmatpush1.msra.mxu0 0.0
        %1707 = vmatprep.subr.mxu0 0.0
        %1708 = vmatpush1.msra.mxu0 0.0
        %1709 = vmatprep.mubr.f32.mxu0 0.0
        %1710 = vmatmul.mubr.f32.gmra.mrb[0].mxu0 %v1643
        %v1711 = vpop.f32.mrb[0].mxu0
        %v1712 = vadd.f32 %v1640, %v1711
        %v1713 = vpop.f32.mrb[0].mxu0
        %1714 = vdwg.mxu0
        %v1715 = vxor.u32 %v1712, 2147483648
        %v1716 = vmul.f32 %v1715, 1.442695
        %v1717 = vpow.pop %v1716
        %v1718 = vadd.f32 %v1717, 1.0
        %v1719 = vrcp.pop %v1718
        %v1720 = vmul.f32 1.0, %v1719
        %v1721 = vmul.f32 %v1712, %v1720
        %v1722 = vld [vmem:[%s9] sm:$0xff]
        %v1723 = vld [vmem:[%s9 + $0x8] sm:$0xff]
        %v1724 = vld [vmem:[%s9 + $0x10] sm:$0xff]
        %v1725 = vld [vmem:[%s9 + $0x18] sm:$0xff]
        %v1726 = vld [vmem:[%s10] sm:$0xff]
        %v1727 = vld [vmem:[%s10 + $0x8] sm:$0xff]
        %v1728 = vld [vmem:[%s10 + $0x10] sm:$0xff]
        %v1729 = vld [vmem:[%s10 + $0x18] sm:$0xff]
        %vm1730 = vcmask 15360
        %v1732 = vsel %vm1730, %v1722, 0
        %v1735 = vsel %vm1730, %v1723, 0
        %v1738 = vsel %vm1730, %v1724, 0
        %v1741 = vsel %vm1730, %v1725, 0
        %vm1743 = vcmask 1041408
        %v1745 = vsel %vm1743, %v1721, 0
        %1747 = vmatprep.subr.mxu0 0.0
        %1748 = vmatpush1.msra.mxu0 %v1745
        %1749 = vmatprep.subr.mxu0 0.0
        %1750 = vmatpush1.msra.mxu0 0.0
        %1751 = vmatprep.subr.mxu0 0.0
        %1752 = vmatpush1.msra.mxu0 0.0
        %1753 = vmatprep.subr.mxu0 0.0
        %1754 = vmatpush1.msra.mxu0 0.0
        %1755 = vmatprep.subr.mxu0 0.0
        %1756 = vmatpush1.msra.mxu0 0.0
        %1757 = vmatprep.subr.mxu0 0.0
        %1758 = vmatpush1.msra.mxu0 0.0
        %1759 = vmatprep.subr.mxu0 0.0
        %1760 = vmatpush1.msra.mxu0 0.0
        %1761 = vmatprep.subr.mxu0 0.0
        %1762 = vmatpush1.msra.mxu0 0.0
        %1763 = vmatprep.subr.mxu0 0.0
        %1764 = vmatpush1.msra.mxu0 0.0
        %1765 = vmatprep.subr.mxu0 0.0
        %1766 = vmatpush1.msra.mxu0 0.0
        %1767 = vmatprep.subr.mxu0 0.0
        %1768 = vmatpush1.msra.mxu0 0.0
        %1769 = vmatprep.subr.mxu0 0.0
        %1770 = vmatpush1.msra.mxu0 0.0
        %1771 = vmatprep.subr.mxu0 0.0
        %1772 = vmatpush1.msra.mxu0 0.0
        %1773 = vmatprep.subr.mxu0 0.0
        %1774 = vmatpush1.msra.mxu0 0.0
        %1775 = vmatprep.subr.mxu0 0.0
        %1776 = vmatpush1.msra.mxu0 0.0
        %1777 = vmatprep.subr.mxu0 0.0
        %1778 = vmatpush1.msra.mxu0 0.0
        %1779 = vmatprep.subr.mxu0 0.0
        %1780 = vmatpush1.msra.mxu0 0.0
        %1781 = vmatprep.subr.mxu0 0.0
        %1782 = vmatpush1.msra.mxu0 0.0
        %1783 = vmatprep.subr.mxu0 0.0
        %1784 = vmatpush1.msra.mxu0 0.0
        %1785 = vmatprep.subr.mxu0 0.0
        %1786 = vmatpush1.msra.mxu0 0.0
        %1787 = vmatprep.subr.mxu0 0.0
        %1788 = vmatpush1.msra.mxu0 0.0
        %1789 = vmatprep.subr.mxu0 0.0
        %1790 = vmatpush1.msra.mxu0 0.0
        %1791 = vmatprep.subr.mxu0 0.0
        %1792 = vmatpush1.msra.mxu0 0.0
        %1793 = vmatprep.subr.mxu0 0.0
        %1794 = vmatpush1.msra.mxu0 0.0
        %1795 = vmatprep.subr.mxu0 0.0
        %1796 = vmatpush1.msra.mxu0 0.0
        %1797 = vmatprep.subr.mxu0 0.0
        %1798 = vmatpush1.msra.mxu0 0.0
        %1799 = vmatprep.subr.mxu0 0.0
        %1800 = vmatpush1.msra.mxu0 0.0
        %1801 = vmatprep.subr.mxu0 0.0
        %1802 = vmatpush1.msra.mxu0 0.0
        %1803 = vmatprep.subr.mxu0 0.0
        %1804 = vmatpush1.msra.mxu0 0.0
        %1805 = vmatprep.subr.mxu0 0.0
        %1806 = vmatpush1.msra.mxu0 0.0
        %1807 = vmatprep.subr.mxu0 0.0
        %1808 = vmatpush1.msra.mxu0 0.0
        %1809 = vmatprep.subr.mxu0 0.0
        %1810 = vmatpush1.msra.mxu0 0.0
        %1811 = vmatprep.mubr.f32.mxu0 0.0
        %1812 = vmatmul.mubr.f32.gmra.mrb[0].mxu0 %v1732
        %v1813 = vpop.f32.mrb[0].mxu0
        %v1814 = vadd.f32 %v1726, %v1813
        %v1815 = vpop.f32.mrb[0].mxu0
        %1816 = vmatprep.mubr.f32.mxu0 0.0
        %1817 = vmatmul.mubr.f32.gmra.mrb[0].mxu0 %v1735
        %v1818 = vpop.f32.mrb[0].mxu0
        %v1819 = vadd.f32 %v1727, %v1818
        %v1820 = vpop.f32.mrb[0].mxu0
        %1821 = vmatprep.mubr.f32.mxu0 0.0
        %1822 = vmatmul.mubr.f32.gmra.mrb[0].mxu0 %v1738
        %v1823 = vpop.f32.mrb[0].mxu0
        %v1824 = vadd.f32 %v1728, %v1823
        %v1825 = vpop.f32.mrb[0].mxu0
        %1826 = vmatprep.mubr.f32.mxu0 0.0
        %1827 = vmatmul.mubr.f32.gmra.mrb[0].mxu0 %v1741
        %v1828 = vpop.f32.mrb[0].mxu0
        %v1829 = vadd.f32 %v1729, %v1828
        %v1830 = vpop.f32.mrb[0].mxu0
        %1831 = vdwg.mxu0
        %v1832 = vxor.u32 %v1814, 2147483648
        %v1833 = vxor.u32 %v1819, 2147483648
        %v1834 = vxor.u32 %v1824, 2147483648
        %v1835 = vxor.u32 %v1829, 2147483648
        %v1836 = vmul.f32 %v1832, 1.442695
        %v1837 = vpow.pop %v1836
        %v1838 = vmul.f32 %v1833, 1.442695
        %v1839 = vpow.pop %v1838
        %v1840 = vmul.f32 %v1834, 1.442695
        %v1841 = vpow.pop %v1840
        %v1842 = vmul.f32 %v1835, 1.442695
        %v1843 = vpow.pop %v1842
        %v1844 = vadd.f32 %v1837, 1.0
        %v1845 = vadd.f32 %v1839, 1.0
        %v1846 = vadd.f32 %v1841, 1.0
        %v1847 = vadd.f32 %v1843, 1.0
        %v1848 = vrcp.pop %v1844
        %v1849 = vmul.f32 1.0, %v1848
        %v1850 = vrcp.pop %v1845
        %v1851 = vmul.f32 1.0, %v1850
        %v1852 = vrcp.pop %v1846
        %v1853 = vmul.f32 1.0, %v1852
        %v1854 = vrcp.pop %v1847
        %v1855 = vmul.f32 1.0, %v1854
        %v1856 = vld [vmem:[%s11] sm:$0xff]
        %1858 = vset.pattern.permute.xlu0 0
        %1859 = vperm.xlu0 %1858, %v1849
        %v1860 = vpop.permute.xlu0 %1859
        %1863 = vset.pattern.permute.xlu0 0
        %1864 = vperm.xlu0 %1863, %v1851
        %v1865 = vpop.permute.xlu0 %1864
        %1868 = vset.pattern.permute.xlu0 0
        %1869 = vperm.xlu0 %1868, %v1853
        %v1870 = vpop.permute.xlu0 %1869
        %1873 = vset.pattern.permute.xlu0 0
        %1874 = vperm.xlu0 %1873, %v1855
        %v1875 = vpop.permute.xlu0 %1874
        %v1877 = vmul.f32 %v1614, %v1860
        %v1878 = vmul.f32 %v1615, %v1860
        %v1879 = vmul.f32 %v1616, %v1865
        %v1880 = vmul.f32 %v1617, %v1865
        %v1881 = vmul.f32 %v1618, %v1870
        %v1882 = vmul.f32 %v1619, %v1870
        %v1883 = vmul.f32 %v1620, %v1875
        %v1884 = vmul.f32 %v1621, %v1875
        %v1886 = vsel %vm1641, %v1856, 0
        %1888 = vmatprep.subr.mxu0 %v1878
        %1889 = vmatpush1.msra.mxu0 %v1877
        %1890 = vmatprep.subr.mxu0 %v1880
        %1891 = vmatpush1.msra.mxu0 %v1879
        %1892 = vmatprep.subr.mxu0 %v1882
        %1893 = vmatpush1.msra.mxu0 %v1881
        %1894 = vmatprep.subr.mxu0 %v1884
        %1895 = vmatpush1.msra.mxu0 %v1883
        %1896 = vmatprep.subr.mxu0 0.0
        %1897 = vmatpush1.msra.mxu0 0.0
        %1898 = vmatprep.subr.mxu0 0.0
        %1899 = vmatpush1.msra.mxu0 0.0
        %1900 = vmatprep.subr.mxu0 0.0
        %1901 = vmatpush1.msra.mxu0 0.0
        %1902 = vmatprep.subr.mxu0 0.0
        %1903 = vmatpush1.msra.mxu0 0.0
        %1904 = vmatprep.subr.mxu0 0.0
        %1905 = vmatpush1.msra.mxu0 0.0
        %1906 = vmatprep.subr.mxu0 0.0
        %1907 = vmatpush1.msra.mxu0 0.0
        %1908 = vmatprep.subr.mxu0 0.0
        %1909 = vmatpush1.msra.mxu0 0.0
        %1910 = vmatprep.subr.mxu0 0.0
        %1911 = vmatpush1.msra.mxu0 0.0
        %1912 = vmatprep.subr.mxu0 0.0
        %1913 = vmatpush1.msra.mxu0 0.0
        %1914 = vmatprep.subr.mxu0 0.0
        %1915 = vmatpush1.msra.mxu0 0.0
        %1916 = vmatprep.subr.mxu0 0.0
        %1917 = vmatpush1.msra.mxu0 0.0
        %1918 = vmatprep.subr.mxu0 0.0
        %1919 = vmatpush1.msra.mxu0 0.0
        %1920 = vmatprep.subr.mxu0 0.0
        %1921 = vmatpush1.msra.mxu0 0.0
        %1922 = vmatprep.subr.mxu0 0.0
        %1923 = vmatpush1.msra.mxu0 0.0
        %1924 = vmatprep.subr.mxu0 0.0
        %1925 = vmatpush1.msra.mxu0 0.0
        %1926 = vmatprep.subr.mxu0 0.0
        %1927 = vmatpush1.msra.mxu0 0.0
        %1928 = vmatprep.subr.mxu0 0.0
        %1929 = vmatpush1.msra.mxu0 0.0
        %1930 = vmatprep.subr.mxu0 0.0
        %1931 = vmatpush1.msra.mxu0 0.0
        %1932 = vmatprep.subr.mxu0 0.0
        %1933 = vmatpush1.msra.mxu0 0.0
        %1934 = vmatprep.subr.mxu0 0.0
        %1935 = vmatpush1.msra.mxu0 0.0
        %1936 = vmatprep.subr.mxu0 0.0
        %1937 = vmatpush1.msra.mxu0 0.0
        %1938 = vmatprep.subr.mxu0 0.0
        %1939 = vmatpush1.msra.mxu0 0.0
        %1940 = vmatprep.subr.mxu0 0.0
        %1941 = vmatpush1.msra.mxu0 0.0
        %1942 = vmatprep.subr.mxu0 0.0
        %1943 = vmatpush1.msra.mxu0 0.0
        %1944 = vmatprep.subr.mxu0 0.0
        %1945 = vmatpush1.msra.mxu0 0.0
        %1946 = vmatprep.subr.mxu0 0.0
        %1947 = vmatpush1.msra.mxu0 0.0
        %1948 = vmatprep.subr.mxu0 0.0
        %1949 = vmatpush1.msra.mxu0 0.0
        %1950 = vmatprep.subr.mxu0 0.0
        %1951 = vmatpush1.msra.mxu0 0.0
        %1952 = vmatprep.mubr.f32.mxu0 0.0
        %1953 = vmatmul.mubr.f32.gmra.mrb[0].mxu0 %v1886
        %v1954 = vpop.f32.mrb[0].mxu0
        %v1955 = vadd.f32 0.0, %v1954
        %v1956 = vpop.f32.mrb[0].mxu0
        %v1957 = vadd.f32 0.0, %v1956
        %1958 = vdwg.mxu0
        %v1959 = vld [vmem:[%s12] sm:$0xff]
        %1961 = vset.pattern.permute.xlu0 0
        %1962 = vperm.xlu0 %1961, %v1959
        %v1963 = vpop.permute.xlu0 %1962
        %v1965 = vmul.f32 %v1955, %v1963
        %v1966 = vmul.f32 %v1957, %v1963
        %v1967 = vld [vmem:[%s13] sm:$0xff]
        %1969 = vset.pattern.permute.xlu0 0
        %1970 = vperm.xlu0 %1969, %v1967
        %v1971 = vpop.permute.xlu0 %1970
        %v1973 = vadd.f32 %v1965, %v1971
        %v1974 = vadd.f32 %v1966, %v1971
        %v1975 = vxor.u32 %v1973, 2147483648
        %v1976 = vxor.u32 %v1974, 2147483648
        %v1977 = vmul.f32 %v1975, 1.442695
        %v1978 = vpow.pop %v1977
        %v1979 = vmul.f32 %v1976, 1.442695
        %v1980 = vpow.pop %v1979
        %v1981 = vadd.f32 %v1978, 1.0
        %v1982 = vadd.f32 %v1980, 1.0
        %v1983 = vrcp.pop %v1981
        %v1984 = vmul.f32 1.0, %v1983
        %v1985 = vrcp.pop %v1982
        %v1986 = vmul.f32 1.0, %v1985
        %v1987 = vmul.f32 %v1973, %v1984
        %v1988 = vmul.f32 %v1974, %v1986
        %v1989 = vunpack.c.l.bf16 %v467
        %v1990 = vunpack.c.h.bf16 %v467
        %v1991 = vadd.f32 %v1987, %v1989
        %v1992 = vadd.f32 %v1988, %v1990
        %1993 = vst [vmem:[%s460] sm:$0xff] %v1991
        %1994 = vst [vmem:[%s460 + $0x8] sm:$0xff] %v1992
        %s1995 = sand.u32 %s335, 1
        %s1996 = scalar_lea.sflag [#allocation4], %s1995
        %s1997 = sand.u32 %s335, 1
        %s1998 = smul.addr %s1997, 16
        %s1999 = scalar_lea.vmem [#allocation3], %s1998
        // Predicated region
        $region77: #{tpu_custom_call.1} parent=75 // pred_check
          %p2000 = pneg %p345
        $region78: #{tpu_custom_call.1} parent=75 // pred_check_branch
          %2002 = sbr.rel (%p2000) target = $region80
        $region79: #{tpu_custom_call.1} parent=75 // pred_region
          %s2004 = ssub.s32 256, 256
          %2005 = vsyncadd %s1996, %s2004
          %s2006 = smul.addr %s28, 2
          %s2007 = smul.addr %s2006, 128
          %s2008 = scalar_lea.hbm %s14, %s2007
          %s2010 = sshll.u32 %s1999, 4
          %s2011 = int_to_ptr.vmem [resolvable:$true] %s2010
          %2013 = dma.vmem_to_hbm [thread:$0]  %s2011, 256, %s2008, %s1996
        $region80: #{tpu_custom_call.1} parent=75 // pred_fallthru
          _
      $region76: #{tpu_custom_call.1} parent=5 // pred_fallthru
        _
      %p2014 = scmp.le.s32.totalorder 2, %s23
      // Predicated region
      $region81: #{tpu_custom_call.1} parent=5 // pred_check
        %p2015 = pneg %p2014
      $region82: #{tpu_custom_call.1} parent=5 // pred_check_branch
        %2017 = sbr.rel (%p2015) target = $region84
      $region83: #{tpu_custom_call.1} parent=5 // pred_region
        %s2018 = ssub.s32 %s23, 2
        // Predicated region
        $region85: #{tpu_custom_call.1} parent=83 // pred_check
          %p2019 = pneg %p351
        $region86: #{tpu_custom_call.1} parent=83 // pred_check_branch
          %2021 = sbr.rel (%p2019) target = $region88
        $region87: #{tpu_custom_call.1} parent=83 // pred_region
          %s2022 = sand.u32 %s336, 1
          %s2023 = scalar_lea.sflag [#allocation4], %s2022
          %s2024 = sand.u32 %s336, 1
          %s2025 = smul.addr %s2024, 16
          %s2026 = scalar_lea.vmem [#allocation3], %s2025
          %2027 = dma.done %s2023, 256
        $region88: #{tpu_custom_call.1} parent=83 // pred_fallthru
          _
      $region84: #{tpu_custom_call.1} parent=5 // pred_fallthru
        _
    $region6: #{tpu_custom_call.1} parent=1 // loop_footer
      %s27 = sadd.s32 1, %s23
    $region7: #{tpu_custom_call.1} parent=1 // loop_footer_branch
      %22 = sbr.rel target = $region3
    $region8: #{tpu_custom_call.1} parent=1 // loop_exit
      _
    %2028 = vsyncpa [#allocation4], 1
    %s2029 = scalar_lea.sflag [#allocation4], 1
    %2030 = vsyncpa %s2029, 1

</llo_original>
